<compile_context>
chip_gen: v7x
topology: tpu7x:2x2x1
jax: 0.10.0
libtpu: 0.0.40
codegen_flags: <defaults>
</compile_context>

<pallas_src>
import jax
import jax.numpy as jnp
import numpy as np
from jax.experimental import pallas as pl
from jax.experimental.pallas import tpu as pltpu


def _mlp(x, w1, b1, w2, b2, w3, b3):
    """(Linear -> Tanh) x 3 over the last axis."""
    x = jnp.tanh(jnp.dot(x, w1, preferred_element_type=jnp.float32) + b1)
    x = jnp.tanh(jnp.dot(x, w2, preferred_element_type=jnp.float32) + b2)
    x = jnp.tanh(jnp.dot(x, w3, preferred_element_type=jnp.float32) + b3)
    return x


def deep_factor_kernel(z_ref, zlast_ref, r_ref,
                       w1_ref, b1_ref, w2_ref, b2_ref, w3_ref, b3_ref,
                       f_ref, nc_ref):
    Tt, N, D = z_ref.shape
    K = w3_ref.shape[1]

    w1, b1 = w1_ref[...], b1_ref[...]
    w2, b2 = w2_ref[...], b2_ref[...]
    w3, b3 = w3_ref[...], b3_ref[...]

    # ---- MLP over characteristics, flattened over (t, n) rows ----
    x = _mlp(z_ref[...].reshape(Tt * N, D), w1, b1, w2, b2, w3, b3)   # (Tt*N, K)

    # ---- per-time statistics over the asset axis (PyTorch dim=1, biased var) ----
    x3 = x.reshape(Tt, N, K)
    mean = jnp.mean(x3, axis=1)                                       # (Tt, K)
    var = jnp.mean((x3 - mean[:, None, :]) ** 2, axis=1)              # (Tt, K)
    inv = 1.0 / (jnp.sqrt(var) + 1e-5)                                # (Tt, K)

    # ---- x[-1] recomputed from z[-1]: tiny (N, D) MLP keeps grid steps
    # independent so the T axis can stay "parallel" ----
    x_last = _mlp(zlast_ref[...], w1, b1, w2, b2, w3, b3)             # (N, K)

    # ---- f[t,k] = sum_n nc[t,n,k] * r[t,n]
    #            = inv[t,k] * ((r @ x_last)[t,k] - mean[t,k] * sum_n r[t,n]) ----
    r = r_ref[...]                                                    # (Tt, N)
    rx = jnp.dot(r, x_last, preferred_element_type=jnp.float32)       # (Tt, K)
    rsum = jnp.sum(r, axis=1, keepdims=True)                          # (Tt, 1)
    f_ref[...] = ((rx - mean * rsum) * inv).astype(f_ref.dtype)

    # ---- normalized characteristics, stored lane-dense as (Tt, N*K) ----
    # NOTE: transformed_char_a/b and the two softmaxes in the reference are dead
    # code (w_tilde is immediately overwritten by normalized_char) -> omitted.
    nc3 = (x_last[None, :, :] - mean[:, None, :]) * inv[:, None, :]   # (Tt, N, K)
    nc_ref[...] = nc3.reshape(Tt, N * K).astype(nc_ref.dtype)


def deep_factor_forward(z, r, m, target, params, lam, lam2, *, t_tile=None):
    w1, b1, w2, b2, w3, b3, beta, gamma = params
    T, N, D = z.shape
    H1, H2, K = w1.shape[1], w2.shape[1], w3.shape[1]

    if t_tile is None:
        t_tile = min(T, 8)
    # TODO(synk): pad / mask the last tile instead of requiring divisibility.
    assert T % t_tile == 0, "T must be a multiple of the time tile"
    grid = (T // t_tile,)

    z_last = z[-1]                                                    # (N, D)
    const2 = lambda i: (0, 0)

    flops = int(2 * T * N * (D * H1 + H1 * H2 + H2 * K) + 4 * T * N * K)
    transcendentals = int(T * N * (H1 + H2 + K))
    bytes_accessed = int(4 * (z.size + r.size + z_last.size
                              + w1.size + w2.size + w3.size
                              + b1.size + b2.size + b3.size
                              + T * K + T * N * K))

    f, nc_packed = pl.pallas_call(
        deep_factor_kernel,
        out_shape=(jax.ShapeDtypeStruct((T, K), jnp.float32),
                   jax.ShapeDtypeStruct((T, N * K), jnp.float32)),
        grid_spec=pltpu.PrefetchScalarGridSpec(
            num_scalar_prefetch=0,
            grid=grid,
            in_specs=[
                pl.BlockSpec((t_tile, N, D), lambda i: (i, 0, 0)),    # z    (blocked on T)
                pl.BlockSpec((N, D), const2),                         # z[-1]
                pl.BlockSpec((t_tile, N), lambda i: (i, 0)),          # r    (blocked on T)
                pl.BlockSpec((D, H1), const2), pl.BlockSpec((1, H1), const2),
                pl.BlockSpec((H1, H2), const2), pl.BlockSpec((1, H2), const2),
                pl.BlockSpec((H2, K), const2), pl.BlockSpec((1, K), const2),
            ],
            out_specs=(
                pl.BlockSpec((t_tile, K), lambda i: (i, 0)),          # f
                pl.BlockSpec((t_tile, N * K), lambda i: (i, 0)),      # nc (lane-dense)
            ),
        ),
        compiler_params=pltpu.CompilerParams(
            dimension_semantics=("parallel",)),
        cost_estimate=pl.CostEstimate(
            flops=flops,
            transcendentals=transcendentals,
            bytes_accessed=bytes_accessed),
    )(z, z_last, r, w1, b1, w2, b2, w3, b3)

    nc = nc_packed.reshape(T, N, K)

    # ---- tiny scalar loss terms (O(T*P)) kept in the wrapper so the kernel's
    # T axis has no cross-T reductions and can shard across TensorCores ----
    target_hat = f @ beta + m @ gamma
    diff = target - target_hat
    loss1 = jnp.mean(diff ** 2)                   # MSE(target, target_hat)
    alpha = jnp.mean(diff, axis=0)
    loss2 = jnp.mean(alpha ** 2)                  # MSE(alpha, 0)
    # L1 only on the first Linear (Sequential index i < len(layer_size) - 2).
    aw = jnp.abs(w1)
    weights_l1 = jnp.sum(aw) - jnp.sum(jnp.diagonal(aw))
    loss = loss1 + lam * loss2 + lam2 * weights_l1
    return loss, f, nc


def reference(z, r, m, target, params, lam, lam2):
    """Pure-JAX reference with the PyTorch module's semantics."""
    w1, b1, w2, b2, w3, b3, beta, gamma = params
    x = jnp.tanh(z @ w1 + b1)
    x = jnp.tanh(x @ w2 + b2)
    x = jnp.tanh(x @ w3 + b3)
    mean = x.mean(axis=1, keepdims=True)
    var = ((x - mean) ** 2).mean(axis=1, keepdims=True)
    nc = (x[-1] - mean) / (jnp.sqrt(var) + 1e-5)
    f = jnp.einsum('tnk,tn->tk', nc, r)
    target_hat = f @ beta + m @ gamma
    diff = target - target_hat
    alpha = diff.mean(axis=0)
    loss1 = jnp.mean(diff ** 2)
    loss2 = jnp.mean(alpha ** 2)
    aw = jnp.abs(w1)
    weights_l1 = jnp.sum(aw) - jnp.sum(jnp.diagonal(aw))
    loss = loss1 + lam * loss2 + lam2 * weights_l1
    return loss, f, nc


if __name__ == "__main__":
    # Small deterministic config consistent with the module:
    # input_dim=8, layer_size=(16,16,8) -> K=8 factors, ff_n=4, port_n=8,
    # T=16 time steps, N=16 assets (so N*K = 128 exactly -> lane-dense nc).
    T, N, D = 16, 16, 8
    layer_size = (16, 16, 8)
    ff_n, port_n = 4, 8
    lam, lam2 = 0.5, 0.01

    keys = jax.random.split(jax.random.PRNGKey(0), 12)
    z = jax.random.normal(keys[0], (T, N, D), jnp.float32)
    r = jax.random.normal(keys[1], (T, N), jnp.float32)
    m = jax.random.normal(keys[2], (T, ff_n), jnp.float32)
    target = jax.random.normal(keys[3], (T, port_n), jnp.float32)

    w1 = 0.3 * jax.random.normal(keys[4], (D, layer_size[0]), jnp.float32)
    b1 = 0.1 * jax.random.normal(keys[5], (1, layer_size[0]), jnp.float32)
    w2 = 0.3 * jax.random.normal(keys[6], (layer_size[0], layer_size[1]), jnp.float32)
    b2 = 0.1 * jax.random.normal(keys[7], (1, layer_size[1]), jnp.float32)
    w3 = 0.3 * jax.random.normal(keys[8], (layer_size[1], layer_size[2]), jnp.float32)
    b3 = 0.1 * jax.random.normal(keys[9], (1, layer_size[2]), jnp.float32)
    beta = jax.random.normal(keys[10], (layer_size[2], port_n), jnp.float32)
    gamma = jax.random.normal(keys[11], (ff_n, port_n), jnp.float32)
    params = (w1, b1, w2, b2, w3, b3, beta, gamma)

    loss, f, nc = deep_factor_forward(z, r, m, target, params, lam, lam2, t_tile=8)
    jax.block_until_ready((loss, f, nc))

    loss_r, f_r, nc_r = reference(z, r, m, target, params, lam, lam2)
    np.testing.assert_allclose(np.asarray(loss), np.asarray(loss_r), rtol=1e-4, atol=1e-4)
    np.testing.assert_allclose(np.asarray(f), np.asarray(f_r), rtol=1e-4, atol=1e-4)
    np.testing.assert_allclose(np.asarray(nc), np.asarray(nc_r), rtol=1e-4, atol=1e-4)

    print("KERNEL_OK")
</pallas_src>

<mosaic_0001>
module attributes {stable_mosaic.version = 11 : i64} {
  func.func @deep_factor_kernel(%arg0: i32, %arg1: memref<8x16x8xf32, #tpu.memory_space<vmem>>, %arg2: memref<16x8xf32, #tpu.memory_space<vmem>>, %arg3: memref<8x16xf32, #tpu.memory_space<vmem>>, %arg4: memref<8x16xf32, #tpu.memory_space<vmem>>, %arg5: memref<1x16xf32, #tpu.memory_space<vmem>>, %arg6: memref<16x16xf32, #tpu.memory_space<vmem>>, %arg7: memref<1x16xf32, #tpu.memory_space<vmem>>, %arg8: memref<16x8xf32, #tpu.memory_space<vmem>>, %arg9: memref<1x8xf32, #tpu.memory_space<vmem>>, %arg10: memref<8x8xf32, #tpu.memory_space<vmem>>, %arg11: memref<8x128xf32, #tpu.memory_space<vmem>>) attributes {dimension_semantics = [#tpu.dimension_semantics<parallel>], iteration_bounds = array<i64: 2>, scalar_prefetch = 0 : i64, scratch_operands = 0 : i64, tpu.core_type = #tpu.core_type<tc>, window_params = [{transform_indices = @transform_0, window_bounds = array<i64: 8, 16, 8>}, {pipeline_mode = #tpu.pipeline_mode<synchronous>, transform_indices = @transform_1, window_bounds = array<i64: 16, 8>}, {transform_indices = @transform_2, window_bounds = array<i64: 8, 16>}, {pipeline_mode = #tpu.pipeline_mode<synchronous>, transform_indices = @transform_3, window_bounds = array<i64: 8, 16>}, {pipeline_mode = #tpu.pipeline_mode<synchronous>, transform_indices = @transform_4, window_bounds = array<i64: 1, 16>}, {pipeline_mode = #tpu.pipeline_mode<synchronous>, transform_indices = @transform_5, window_bounds = array<i64: 16, 16>}, {pipeline_mode = #tpu.pipeline_mode<synchronous>, transform_indices = @transform_6, window_bounds = array<i64: 1, 16>}, {pipeline_mode = #tpu.pipeline_mode<synchronous>, transform_indices = @transform_7, window_bounds = array<i64: 16, 8>}, {pipeline_mode = #tpu.pipeline_mode<synchronous>, transform_indices = @transform_8, window_bounds = array<i64: 1, 8>}, {transform_indices = @transform_9, window_bounds = array<i64: 8, 8>}, {transform_indices = @transform_10, window_bounds = array<i64: 8, 128>}]} {
    %c0 = arith.constant 0 : index
    %c0_0 = arith.constant 0 : index
    %0 = vector.load %arg4[%c0, %c0_0] : memref<8x16xf32, #tpu.memory_space<vmem>>, vector<8x16xf32>
    %c0_1 = arith.constant 0 : index
    %c0_2 = arith.constant 0 : index
    %1 = vector.load %arg5[%c0_1, %c0_2] : memref<1x16xf32, #tpu.memory_space<vmem>>, vector<1x16xf32>
    %c0_3 = arith.constant 0 : index
    %c0_4 = arith.constant 0 : index
    %2 = vector.load %arg6[%c0_3, %c0_4] : memref<16x16xf32, #tpu.memory_space<vmem>>, vector<16x16xf32>
    %c0_5 = arith.constant 0 : index
    %c0_6 = arith.constant 0 : index
    %3 = vector.load %arg7[%c0_5, %c0_6] : memref<1x16xf32, #tpu.memory_space<vmem>>, vector<1x16xf32>
    %c0_7 = arith.constant 0 : index
    %c0_8 = arith.constant 0 : index
    %4 = vector.load %arg8[%c0_7, %c0_8] : memref<16x8xf32, #tpu.memory_space<vmem>>, vector<16x8xf32>
    %c0_9 = arith.constant 0 : index
    %c0_10 = arith.constant 0 : index
    %5 = vector.load %arg9[%c0_9, %c0_10] : memref<1x8xf32, #tpu.memory_space<vmem>>, vector<1x8xf32>
    %c0_11 = arith.constant 0 : index
    %c0_12 = arith.constant 0 : index
    %c0_13 = arith.constant 0 : index
    %6 = vector.load %arg1[%c0_11, %c0_12, %c0_13] : memref<8x16x8xf32, #tpu.memory_space<vmem>>, vector<8x16x8xf32>
    %7 = vector.shape_cast %6 : vector<8x16x8xf32> to vector<128x8xf32>
    %cst = arith.constant dense<0.000000e+00> : vector<128x16xf32>
    %8 = tpu.matmul %7, %0, %cst {dimension_numbers = #tpu.dot_dimension_numbers<[1], [0], [0], [1], [0, 0, 1, 1], [], []>} : vector<128x8xf32>, vector<8x16xf32>, vector<128x16xf32> -> vector<128x16xf32>
    %9 = vector.broadcast %1 : vector<1x16xf32> to vector<128x16xf32>
    %10 = arith.addf %8, %9 : vector<128x16xf32>
    %11 = math.tanh %10 : vector<128x16xf32>
    %cst_14 = arith.constant dense<0.000000e+00> : vector<128x16xf32>
    %12 = tpu.matmul %11, %2, %cst_14 {dimension_numbers = #tpu.dot_dimension_numbers<[1], [0], [0], [1], [0, 0, 1, 1], [], []>} : vector<128x16xf32>, vector<16x16xf32>, vector<128x16xf32> -> vector<128x16xf32>
    %13 = vector.broadcast %3 : vector<1x16xf32> to vector<128x16xf32>
    %14 = arith.addf %12, %13 : vector<128x16xf32>
    %15 = math.tanh %14 : vector<128x16xf32>
    %cst_15 = arith.constant dense<0.000000e+00> : vector<128x8xf32>
    %16 = tpu.matmul %15, %4, %cst_15 {dimension_numbers = #tpu.dot_dimension_numbers<[1], [0], [0], [1], [0, 0, 1, 1], [], []>} : vector<128x16xf32>, vector<16x8xf32>, vector<128x8xf32> -> vector<128x8xf32>
    %17 = vector.broadcast %5 : vector<1x8xf32> to vector<128x8xf32>
    %18 = arith.addf %16, %17 : vector<128x8xf32>
    %19 = math.tanh %18 : vector<128x8xf32>
    %20 = vector.shape_cast %19 : vector<128x8xf32> to vector<8x16x8xf32>
    %cst_16 = arith.constant dense<0.000000e+00> : vector<8x8xf32>
    %21 = vector.multi_reduction <add>, %20, %cst_16 [1] : vector<8x16x8xf32> to vector<8x8xf32>
    %cst_17 = arith.constant 1.600000e+01 : f32
    %22 = vector.broadcast %cst_17 : f32 to vector<8x8xf32>
    %23 = arith.divf %21, %22 : vector<8x8xf32>
    %24 = vector.shape_cast %23 : vector<8x8xf32> to vector<8x1x8xf32>
    %25 = vector.broadcast %24 : vector<8x1x8xf32> to vector<8x16x8xf32>
    %26 = arith.subf %20, %25 : vector<8x16x8xf32>
    %27 = arith.mulf %26, %26 : vector<8x16x8xf32>
    %cst_18 = arith.constant dense<0.000000e+00> : vector<8x8xf32>
    %28 = vector.multi_reduction <add>, %27, %cst_18 [1] : vector<8x16x8xf32> to vector<8x8xf32>
    %cst_19 = arith.constant 1.600000e+01 : f32
    %29 = vector.broadcast %cst_19 : f32 to vector<8x8xf32>
    %30 = arith.divf %28, %29 : vector<8x8xf32>
    %31 = math.sqrt %30 : vector<8x8xf32>
    %cst_20 = arith.constant 9.99999974E-6 : f32
    %32 = vector.broadcast %cst_20 : f32 to vector<8x8xf32>
    %33 = arith.addf %31, %32 : vector<8x8xf32>
    %cst_21 = arith.constant 1.000000e+00 : f32
    %34 = vector.broadcast %cst_21 : f32 to vector<8x8xf32>
    %35 = arith.divf %34, %33 : vector<8x8xf32>
    %c0_22 = arith.constant 0 : index
    %c0_23 = arith.constant 0 : index
    %36 = vector.load %arg2[%c0_22, %c0_23] : memref<16x8xf32, #tpu.memory_space<vmem>>, vector<16x8xf32>
    %cst_24 = arith.constant dense<0.000000e+00> : vector<16x16xf32>
    %37 = tpu.matmul %36, %0, %cst_24 {dimension_numbers = #tpu.dot_dimension_numbers<[1], [0], [0], [1], [0, 0, 1, 1], [], []>} : vector<16x8xf32>, vector<8x16xf32>, vector<16x16xf32> -> vector<16x16xf32>
    %38 = vector.broadcast %1 : vector<1x16xf32> to vector<16x16xf32>
    %39 = arith.addf %37, %38 : vector<16x16xf32>
    %40 = math.tanh %39 : vector<16x16xf32>
    %cst_25 = arith.constant dense<0.000000e+00> : vector<16x16xf32>
    %41 = tpu.matmul %40, %2, %cst_25 {dimension_numbers = #tpu.dot_dimension_numbers<[1], [0], [0], [1], [0, 0, 1, 1], [], []>} : vector<16x16xf32>, vector<16x16xf32>, vector<16x16xf32> -> vector<16x16xf32>
    %42 = vector.broadcast %3 : vector<1x16xf32> to vector<16x16xf32>
    %43 = arith.addf %41, %42 : vector<16x16xf32>
    %44 = math.tanh %43 : vector<16x16xf32>
    %cst_26 = arith.constant dense<0.000000e+00> : vector<16x8xf32>
    %45 = tpu.matmul %44, %4, %cst_26 {dimension_numbers = #tpu.dot_dimension_numbers<[1], [0], [0], [1], [0, 0, 1, 1], [], []>} : vector<16x16xf32>, vector<16x8xf32>, vector<16x8xf32> -> vector<16x8xf32>
    %46 = vector.broadcast %5 : vector<1x8xf32> to vector<16x8xf32>
    %47 = arith.addf %45, %46 : vector<16x8xf32>
    %48 = math.tanh %47 : vector<16x8xf32>
    %c0_27 = arith.constant 0 : index
    %c0_28 = arith.constant 0 : index
    %49 = vector.load %arg3[%c0_27, %c0_28] : memref<8x16xf32, #tpu.memory_space<vmem>>, vector<8x16xf32>
    %cst_29 = arith.constant dense<0.000000e+00> : vector<8x8xf32>
    %50 = tpu.matmul %49, %48, %cst_29 {dimension_numbers = #tpu.dot_dimension_numbers<[1], [0], [0], [1], [0, 0, 1, 1], [], []>} : vector<8x16xf32>, vector<16x8xf32>, vector<8x8xf32> -> vector<8x8xf32>
    %cst_30 = arith.constant dense<0.000000e+00> : vector<8xf32>
    %51 = vector.multi_reduction <add>, %49, %cst_30 [1] : vector<8x16xf32> to vector<8xf32>
    %52 = vector.shape_cast %51 : vector<8xf32> to vector<8x1xf32>
    %53 = vector.broadcast %52 : vector<8x1xf32> to vector<8x8xf32>
    %54 = arith.mulf %23, %53 : vector<8x8xf32>
    %55 = arith.subf %50, %54 : vector<8x8xf32>
    %56 = arith.mulf %55, %35 : vector<8x8xf32>
    %c0_31 = arith.constant 0 : index
    %c0_32 = arith.constant 0 : index
    %57 = vector.load %arg10[%c0_31, %c0_32] : memref<8x8xf32, #tpu.memory_space<vmem>>, vector<8x8xf32>
    tpu.vector_store %arg10[%c0_31, %c0_32], %56 {strides = array<i32>} : memref<8x8xf32, #tpu.memory_space<vmem>>, vector<8x8xf32>,
    %58 = vector.shape_cast %48 : vector<16x8xf32> to vector<1x16x8xf32>
    %59 = vector.shape_cast %23 : vector<8x8xf32> to vector<8x1x8xf32>
    %60 = vector.broadcast %58 : vector<1x16x8xf32> to vector<8x16x8xf32>
    %61 = vector.broadcast %59 : vector<8x1x8xf32> to vector<8x16x8xf32>
    %62 = arith.subf %60, %61 : vector<8x16x8xf32>
    %63 = vector.shape_cast %35 : vector<8x8xf32> to vector<8x1x8xf32>
    %64 = vector.broadcast %63 : vector<8x1x8xf32> to vector<8x16x8xf32>
    %65 = arith.mulf %62, %64 : vector<8x16x8xf32>
    %66 = vector.shape_cast %65 : vector<8x16x8xf32> to vector<8x128xf32>
    %c0_33 = arith.constant 0 : index
    %c0_34 = arith.constant 0 : index
    %67 = vector.load %arg11[%c0_33, %c0_34] : memref<8x128xf32, #tpu.memory_space<vmem>>, vector<8x128xf32>
    tpu.vector_store %arg11[%c0_33, %c0_34], %66 {strides = array<i32>} : memref<8x128xf32, #tpu.memory_space<vmem>>, vector<8x128xf32>,
    return
  }
  func.func @transform_0(%arg0: i32) -> (i32, i32, i32) {
    %c0_i32 = arith.constant 0 : i32
    %c0_i32_0 = arith.constant 0 : i32
    %c0_i32_1 = arith.constant 0 : i32
    return %arg0, %c0_i32, %c0_i32_0 : i32, i32, i32
  }
  func.func @transform_1(%arg0: i32) -> (i32, i32) {
    %c0_i32 = arith.constant 0 : i32
    %c0_i32_0 = arith.constant 0 : i32
    %c0_i32_1 = arith.constant 0 : i32
    return %c0_i32, %c0_i32_0 : i32, i32
  }
  func.func @transform_2(%arg0: i32) -> (i32, i32) {
    %c0_i32 = arith.constant 0 : i32
    %c0_i32_0 = arith.constant 0 : i32
    return %arg0, %c0_i32 : i32, i32
  }
  func.func @transform_3(%arg0: i32) -> (i32, i32) {
    %c0_i32 = arith.constant 0 : i32
    %c0_i32_0 = arith.constant 0 : i32
    %c0_i32_1 = arith.constant 0 : i32
    return %c0_i32, %c0_i32_0 : i32, i32
  }
  func.func @transform_4(%arg0: i32) -> (i32, i32) {
    %c0_i32 = arith.constant 0 : i32
    %c0_i32_0 = arith.constant 0 : i32
    %c0_i32_1 = arith.constant 0 : i32
    return %c0_i32, %c0_i32_0 : i32, i32
  }
  func.func @transform_5(%arg0: i32) -> (i32, i32) {
    %c0_i32 = arith.constant 0 : i32
    %c0_i32_0 = arith.constant 0 : i32
    %c0_i32_1 = arith.constant 0 : i32
    return %c0_i32, %c0_i32_0 : i32, i32
  }
  func.func @transform_6(%arg0: i32) -> (i32, i32) {
    %c0_i32 = arith.constant 0 : i32
    %c0_i32_0 = arith.constant 0 : i32
    %c0_i32_1 = arith.constant 0 : i32
    return %c0_i32, %c0_i32_0 : i32, i32
  }
  func.func @transform_7(%arg0: i32) -> (i32, i32) {
    %c0_i32 = arith.constant 0 : i32
    %c0_i32_0 = arith.constant 0 : i32
    %c0_i32_1 = arith.constant 0 : i32
    return %c0_i32, %c0_i32_0 : i32, i32
  }
  func.func @transform_8(%arg0: i32) -> (i32, i32) {
    %c0_i32 = arith.constant 0 : i32
    %c0_i32_0 = arith.constant 0 : i32
    %c0_i32_1 = arith.constant 0 : i32
    return %c0_i32, %c0_i32_0 : i32, i32
  }
  func.func @transform_9(%arg0: i32) -> (i32, i32) {
    %c0_i32 = arith.constant 0 : i32
    %c0_i32_0 = arith.constant 0 : i32
    return %arg0, %c0_i32 : i32, i32
  }
  func.func @transform_10(%arg0: i32) -> (i32, i32) {
    %c0_i32 = arith.constant 0 : i32
    %c0_i32_0 = arith.constant 0 : i32
    return %arg0, %c0_i32 : i32, i32
  }
}

</mosaic_0001>

<llo_original>
// kernel: tpu_custom_call.1
$region0: #{tpu_custom_call.1}
  #allocation0 [shape = 'u32[]', space=smem, size = 0x4, offset = 0x4, fixed_abs, tag = 'smem constant byte address 0x4 - core index']
  #allocation1 [shape = 'u32[144,128]{1,0:T(1,128)}', space=vmem, size = 0x12000, scoped, tag = 'internal scratch']
  %s0 = inlined_call_operand.vmem [shape: f32[16,16,8], index: 0, kind: input, shape index: {}]
  %s1 = inlined_call_operand.vmem [shape: f32[16,8], index: 1, kind: input, shape index: {}]
  %s2 = inlined_call_operand.vmem [shape: f32[16,16], index: 2, kind: input, shape index: {}]
  %s3 = inlined_call_operand.vmem [shape: f32[8,16], index: 3, kind: input, shape index: {}]
  %s4 = inlined_call_operand.vmem [shape: f32[1,16], index: 4, kind: input, shape index: {}]
  %s5 = inlined_call_operand.vmem [shape: f32[16,16], index: 5, kind: input, shape index: {}]
  %s6 = inlined_call_operand.vmem [shape: f32[1,16], index: 6, kind: input, shape index: {}]
  %s7 = inlined_call_operand.vmem [shape: f32[16,8], index: 7, kind: input, shape index: {}]
  %s8 = inlined_call_operand.vmem [shape: f32[1,8], index: 8, kind: input, shape index: {}]
  %s9 = inlined_call_operand.vmem [shape: f32[16,8], index: 9, kind: output, shape index: {0}]
  %s10 = inlined_call_operand.hbm [shape: f32[16,128], index: 10, kind: output, shape index: {1}]
  %11 = xla_tuple %s9, %s10
  %s12 = sld [smem:[#allocation0]]
  $region77: #{tpu_custom_call.1} parent=0
    _
  %s14 = ssub.s32 1, %s12
  %s15 = scalar_select 0, %s14, %s12
  $region1: #{tpu_custom_call.1} parent=0
    #allocation2 [shape = 'u8[8192]{0}', space=vmem, size = 0x2000, scoped, tag = 'output window, operand 1']
    #allocation3 [shape = 's32[2]{0}', space=sflag, size = 0x8, scoped, tag = 'scoped memory for tpu_custom_call.1']
    %16 = vsyncpa [#allocation3], 0
    %s17 = scalar_lea.sflag [#allocation3], 1
    %18 = vsyncpa %s17, 0
    loop: start=0, step=1, limit=4
    $region2: #{tpu_custom_call.1} parent=1 // loop_pre_header
      _
    $region3: #{tpu_custom_call.1} parent=1 // loop_header
      %s20 = sphi 0, %s24
      %p21 = scmp.ge.s32.totalorder %s20, 4
      %s30 = sphi 0, %s32
      %s33 = sphi 0, %s30
      %s34 = sphi 0, %s33
      %s50 = sphi 0, %s34
      %s54 = sphi 0, %s54
      %s56 = sphi 0, %s54
      %s57 = sphi 0, %s56
      %s71 = sphi 0, %s57
      %s77 = sphi 0, %s79
      %s80 = sphi 0, %s77
      %s81 = sphi 0, %s80
      %s97 = sphi 0, %s81
      %s101 = sphi 0, %s101
      %s103 = sphi 0, %s101
      %s104 = sphi 0, %s103
      %s118 = sphi 0, %s104
      %s122 = sphi 0, %s122
      %s124 = sphi 0, %s122
      %s125 = sphi 0, %s124
      %s139 = sphi 0, %s125
      %s143 = sphi 0, %s143
      %s145 = sphi 0, %s143
      %s146 = sphi 0, %s145
      %s160 = sphi 0, %s146
      %s164 = sphi 0, %s164
      %s166 = sphi 0, %s164
      %s167 = sphi 0, %s166
      %s181 = sphi 0, %s167
      %s185 = sphi 0, %s185
      %s187 = sphi 0, %s185
      %s188 = sphi 0, %s187
      %s202 = sphi 0, %s188
      %s206 = sphi 0, %s206
      %s208 = sphi 0, %s206
      %s209 = sphi 0, %s208
      %s223 = sphi 0, %s209
      %s229 = sphi 0, %s231
      %s232 = sphi 0, %s229
      %s233 = sphi 0, %s232
      %s249 = sphi 0, %s233
      %s255 = sphi 0, %s257
      %s258 = sphi 0, %s255
      %s259 = sphi 0, %s258
      %s275 = sphi 0, %s259
    $region4: #{tpu_custom_call.1} parent=1 // loop_header_branch
      %23 = sbr.rel (%p21) target = $region8
    $region5: #{tpu_custom_call.1} parent=1 // loop_body
      %s25 = ssub.s32 %s20, 1
      %s26 = ssub.s32 %s20, 2
      %s27 = sadd.s32 %s20, 1
      %s28 = ssub.s32 %s20, %s27
      %p29 = scmp.eq.s32.totalorder %s28, 0
      %s31 = sadd.s32 %s30, 1
      %s32 = scalar_select %p29, %s30, %s31
      %p35 = pneg %p29
      %p36 = scmp.eq.s32.totalorder %s20, 1
      %p37 = por %p35, %p36
      %p38 = scmp.ne.s32.totalorder %s30, %s33
      %p39 = scmp.eq.s32.totalorder %s20, 0
      %p40 = por %p38, %p39
      %p41 = scmp.ne.s32.totalorder %s30, %s33
      %p42 = scmp.eq.s32.totalorder %s25, 1
      %p43 = por %p41, %p42
      %p44 = scmp.ne.s32.totalorder %s33, %s34
      %p45 = scmp.eq.s32.totalorder %s25, 0
      %p46 = por %p44, %p45
      %p47 = scmp.ne.s32.totalorder %s33, %s34
      %p48 = scmp.eq.s32.totalorder %s26, 1
      %p49 = por %p47, %p48
      %p51 = scmp.ne.s32.totalorder %s34, %s50
      %p52 = scmp.eq.s32.totalorder %s26, 0
      %p53 = por %p51, %p52
      %s55 = sadd.s32 %s54, 1
      %p58 = scmp.eq.s32.totalorder %s20, 1
      %p59 = scmp.ne.s32.totalorder %s54, %s56
      %p60 = scmp.eq.s32.totalorder %s20, 0
      %p61 = por %p59, %p60
      %p62 = scmp.ne.s32.totalorder %s54, %s56
      %p63 = scmp.eq.s32.totalorder %s25, 1
      %p64 = por %p62, %p63
      %p65 = scmp.ne.s32.totalorder %s56, %s57
      %p66 = scmp.eq.s32.totalorder %s25, 0
      %p67 = por %p65, %p66
      %p68 = scmp.ne.s32.totalorder %s56, %s57
      %p69 = scmp.eq.s32.totalorder %s26, 1
      %p70 = por %p68, %p69
      %p72 = scmp.ne.s32.totalorder %s57, %s71
      %p73 = scmp.eq.s32.totalorder %s26, 0
      %p74 = por %p72, %p73
      %s75 = ssub.s32 %s20, %s27
      %p76 = scmp.eq.s32.totalorder %s75, 0
      %s78 = sadd.s32 %s77, 1
      %s79 = scalar_select %p76, %s77, %s78
      %p82 = pneg %p76
      %p83 = scmp.eq.s32.totalorder %s20, 1
      %p84 = por %p82, %p83
      %p85 = scmp.ne.s32.totalorder %s77, %s80
      %p86 = scmp.eq.s32.totalorder %s20, 0
      %p87 = por %p85, %p86
      %p88 = scmp.ne.s32.totalorder %s77, %s80
      %p89 = scmp.eq.s32.totalorder %s25, 1
      %p90 = por %p88, %p89
      %p91 = scmp.ne.s32.totalorder %s80, %s81
      %p92 = scmp.eq.s32.totalorder %s25, 0
      %p93 = por %p91, %p92
      %p94 = scmp.ne.s32.totalorder %s80, %s81
      %p95 = scmp.eq.s32.totalorder %s26, 1
      %p96 = por %p94, %p95
      %p98 = scmp.ne.s32.totalorder %s81, %s97
      %p99 = scmp.eq.s32.totalorder %s26, 0
      %p100 = por %p98, %p99
      %s102 = sadd.s32 %s101, 1
      %p105 = scmp.eq.s32.totalorder %s20, 1
      %p106 = scmp.ne.s32.totalorder %s101, %s103
      %p107 = scmp.eq.s32.totalorder %s20, 0
      %p108 = por %p106, %p107
      %p109 = scmp.ne.s32.totalorder %s101, %s103
      %p110 = scmp.eq.s32.totalorder %s25, 1
      %p111 = por %p109, %p110
      %p112 = scmp.ne.s32.totalorder %s103, %s104
      %p113 = scmp.eq.s32.totalorder %s25, 0
      %p114 = por %p112, %p113
      %p115 = scmp.ne.s32.totalorder %s103, %s104
      %p116 = scmp.eq.s32.totalorder %s26, 1
      %p117 = por %p115, %p116
      %p119 = scmp.ne.s32.totalorder %s104, %s118
      %p120 = scmp.eq.s32.totalorder %s26, 0
      %p121 = por %p119, %p120
      %s123 = sadd.s32 %s122, 1
      %p126 = scmp.eq.s32.totalorder %s20, 1
      %p127 = scmp.ne.s32.totalorder %s122, %s124
      %p128 = scmp.eq.s32.totalorder %s20, 0
      %p129 = por %p127, %p128
      %p130 = scmp.ne.s32.totalorder %s122, %s124
      %p131 = scmp.eq.s32.totalorder %s25, 1
      %p132 = por %p130, %p131
      %p133 = scmp.ne.s32.totalorder %s124, %s125
      %p134 = scmp.eq.s32.totalorder %s25, 0
      %p135 = por %p133, %p134
      %p136 = scmp.ne.s32.totalorder %s124, %s125
      %p137 = scmp.eq.s32.totalorder %s26, 1
      %p138 = por %p136, %p137
      %p140 = scmp.ne.s32.totalorder %s125, %s139
      %p141 = scmp.eq.s32.totalorder %s26, 0
      %p142 = por %p140, %p141
      %s144 = sadd.s32 %s143, 1
      %p147 = scmp.eq.s32.totalorder %s20, 1
      %p148 = scmp.ne.s32.totalorder %s143, %s145
      %p149 = scmp.eq.s32.totalorder %s20, 0
      %p150 = por %p148, %p149
      %p151 = scmp.ne.s32.totalorder %s143, %s145
      %p152 = scmp.eq.s32.totalorder %s25, 1
      %p153 = por %p151, %p152
      %p154 = scmp.ne.s32.totalorder %s145, %s146
      %p155 = scmp.eq.s32.totalorder %s25, 0
      %p156 = por %p154, %p155
      %p157 = scmp.ne.s32.totalorder %s145, %s146
      %p158 = scmp.eq.s32.totalorder %s26, 1
      %p159 = por %p157, %p158
      %p161 = scmp.ne.s32.totalorder %s146, %s160
      %p162 = scmp.eq.s32.totalorder %s26, 0
      %p163 = por %p161, %p162
      %s165 = sadd.s32 %s164, 1
      %p168 = scmp.eq.s32.totalorder %s20, 1
      %p169 = scmp.ne.s32.totalorder %s164, %s166
      %p170 = scmp.eq.s32.totalorder %s20, 0
      %p171 = por %p169, %p170
      %p172 = scmp.ne.s32.totalorder %s164, %s166
      %p173 = scmp.eq.s32.totalorder %s25, 1
      %p174 = por %p172, %p173
      %p175 = scmp.ne.s32.totalorder %s166, %s167
      %p176 = scmp.eq.s32.totalorder %s25, 0
      %p177 = por %p175, %p176
      %p178 = scmp.ne.s32.totalorder %s166, %s167
      %p179 = scmp.eq.s32.totalorder %s26, 1
      %p180 = por %p178, %p179
      %p182 = scmp.ne.s32.totalorder %s167, %s181
      %p183 = scmp.eq.s32.totalorder %s26, 0
      %p184 = por %p182, %p183
      %s186 = sadd.s32 %s185, 1
      %p189 = scmp.eq.s32.totalorder %s20, 1
      %p190 = scmp.ne.s32.totalorder %s185, %s187
      %p191 = scmp.eq.s32.totalorder %s20, 0
      %p192 = por %p190, %p191
      %p193 = scmp.ne.s32.totalorder %s185, %s187
      %p194 = scmp.eq.s32.totalorder %s25, 1
      %p195 = por %p193, %p194
      %p196 = scmp.ne.s32.totalorder %s187, %s188
      %p197 = scmp.eq.s32.totalorder %s25, 0
      %p198 = por %p196, %p197
      %p199 = scmp.ne.s32.totalorder %s187, %s188
      %p200 = scmp.eq.s32.totalorder %s26, 1
      %p201 = por %p199, %p200
      %p203 = scmp.ne.s32.totalorder %s188, %s202
      %p204 = scmp.eq.s32.totalorder %s26, 0
      %p205 = por %p203, %p204
      %s207 = sadd.s32 %s206, 1
      %p210 = scmp.eq.s32.totalorder %s20, 1
      %p211 = scmp.ne.s32.totalorder %s206, %s208
      %p212 = scmp.eq.s32.totalorder %s20, 0
      %p213 = por %p211, %p212
      %p214 = scmp.ne.s32.totalorder %s206, %s208
      %p215 = scmp.eq.s32.totalorder %s25, 1
      %p216 = por %p214, %p215
      %p217 = scmp.ne.s32.totalorder %s208, %s209
      %p218 = scmp.eq.s32.totalorder %s25, 0
      %p219 = por %p217, %p218
      %p220 = scmp.ne.s32.totalorder %s208, %s209
      %p221 = scmp.eq.s32.totalorder %s26, 1
      %p222 = por %p220, %p221
      %p224 = scmp.ne.s32.totalorder %s209, %s223
      %p225 = scmp.eq.s32.totalorder %s26, 0
      %p226 = por %p224, %p225
      %s227 = ssub.s32 %s20, %s27
      %p228 = scmp.eq.s32.totalorder %s227, 0
      %s230 = sadd.s32 %s229, 1
      %s231 = scalar_select %p228, %s229, %s230
      %p234 = pneg %p228
      %p235 = scmp.eq.s32.totalorder %s20, 1
      %p236 = por %p234, %p235
      %p237 = scmp.ne.s32.totalorder %s229, %s232
      %p238 = scmp.eq.s32.totalorder %s20, 0
      %p239 = por %p237, %p238
      %p240 = scmp.ne.s32.totalorder %s229, %s232
      %p241 = scmp.eq.s32.totalorder %s25, 1
      %p242 = por %p240, %p241
      %p243 = scmp.ne.s32.totalorder %s232, %s233
      %p244 = scmp.eq.s32.totalorder %s25, 0
      %p245 = por %p243, %p244
      %p246 = scmp.ne.s32.totalorder %s232, %s233
      %p247 = scmp.eq.s32.totalorder %s26, 1
      %p248 = por %p246, %p247
      %p250 = scmp.ne.s32.totalorder %s233, %s249
      %p251 = scmp.eq.s32.totalorder %s26, 0
      %p252 = por %p250, %p251
      %s253 = ssub.s32 %s20, %s27
      %p254 = scmp.eq.s32.totalorder %s253, 0
      %s256 = sadd.s32 %s255, 1
      %s257 = scalar_select %p254, %s255, %s256
      %p260 = pneg %p254
      %p261 = scmp.eq.s32.totalorder %s20, 1
      %p262 = por %p260, %p261
      %p263 = scmp.ne.s32.totalorder %s255, %s258
      %p264 = scmp.eq.s32.totalorder %s20, 0
      %p265 = por %p263, %p264
      %p266 = scmp.ne.s32.totalorder %s255, %s258
      %p267 = scmp.eq.s32.totalorder %s25, 1
      %p268 = por %p266, %p267
      %p269 = scmp.ne.s32.totalorder %s258, %s259
      %p270 = scmp.eq.s32.totalorder %s25, 0
      %p271 = por %p269, %p270
      %p272 = scmp.ne.s32.totalorder %s258, %s259
      %p273 = scmp.eq.s32.totalorder %s26, 1
      %p274 = por %p272, %p273
      %p276 = scmp.ne.s32.totalorder %s259, %s275
      %p277 = scmp.eq.s32.totalorder %s26, 0
      %p278 = por %p276, %p277
      %p279 = scmp.le.s32.totalorder 1, %s20
      %p280 = scmp.lt.s32.totalorder %s20, 3
      %p281 = pnand %p279, %p280
      %p282 = pneg %p281
      // Predicated region
      $region9: #{tpu_custom_call.1} parent=5 // pred_check
        _
      $region10: #{tpu_custom_call.1} parent=5 // pred_check_branch
        %284 = sbr.rel (%p281) target = $region12
      $region11: #{tpu_custom_call.1} parent=5 // pred_region
        %s285 = ssub.s32 %s20, 1
        // Predicated region
        $region13: #{tpu_custom_call.1} parent=11 // pred_check
          %p286 = pneg %p67
        $region14: #{tpu_custom_call.1} parent=11 // pred_check_branch
          %288 = sbr.rel (%p286) target = $region16
        $region15: #{tpu_custom_call.1} parent=11 // pred_region
          _
        $region16: #{tpu_custom_call.1} parent=11 // pred_fallthru
          _
        // Predicated region
        $region17: #{tpu_custom_call.1} parent=11 // pred_check
          %p289 = pneg %p114
        $region18: #{tpu_custom_call.1} parent=11 // pred_check_branch
          %291 = sbr.rel (%p289) target = $region20
        $region19: #{tpu_custom_call.1} parent=11 // pred_region
          _
        $region20: #{tpu_custom_call.1} parent=11 // pred_fallthru
          _
        // Predicated region
        $region21: #{tpu_custom_call.1} parent=11 // pred_check
          %p292 = pneg %p135
        $region22: #{tpu_custom_call.1} parent=11 // pred_check_branch
          %294 = sbr.rel (%p292) target = $region24
        $region23: #{tpu_custom_call.1} parent=11 // pred_region
          _
        $region24: #{tpu_custom_call.1} parent=11 // pred_fallthru
          _
        // Predicated region
        $region25: #{tpu_custom_call.1} parent=11 // pred_check
          %p295 = pneg %p156
        $region26: #{tpu_custom_call.1} parent=11 // pred_check_branch
          %297 = sbr.rel (%p295) target = $region28
        $region27: #{tpu_custom_call.1} parent=11 // pred_region
          _
        $region28: #{tpu_custom_call.1} parent=11 // pred_fallthru
          _
        // Predicated region
        $region29: #{tpu_custom_call.1} parent=11 // pred_check
          %p298 = pneg %p177
        $region30: #{tpu_custom_call.1} parent=11 // pred_check_branch
          %300 = sbr.rel (%p298) target = $region32
        $region31: #{tpu_custom_call.1} parent=11 // pred_region
          _
        $region32: #{tpu_custom_call.1} parent=11 // pred_fallthru
          _
        // Predicated region
        $region33: #{tpu_custom_call.1} parent=11 // pred_check
          %p301 = pneg %p198
        $region34: #{tpu_custom_call.1} parent=11 // pred_check_branch
          %303 = sbr.rel (%p301) target = $region36
        $region35: #{tpu_custom_call.1} parent=11 // pred_region
          _
        $region36: #{tpu_custom_call.1} parent=11 // pred_fallthru
          _
        // Predicated region
        $region37: #{tpu_custom_call.1} parent=11 // pred_check
          %p304 = pneg %p219
        $region38: #{tpu_custom_call.1} parent=11 // pred_check_branch
          %306 = sbr.rel (%p304) target = $region40
        $region39: #{tpu_custom_call.1} parent=11 // pred_region
          _
        $region40: #{tpu_custom_call.1} parent=11 // pred_fallthru
          _
      $region12: #{tpu_custom_call.1} parent=5 // pred_fallthru
        _
      %p307 = scmp.lt.s32.totalorder %s20, 2
      // Predicated region
      $region41: #{tpu_custom_call.1} parent=5 // pred_check
        %p308 = pneg %p307
      $region42: #{tpu_custom_call.1} parent=5 // pred_check_branch
        %310 = sbr.rel (%p308) target = $region44
      $region43: #{tpu_custom_call.1} parent=5 // pred_region
        // Predicated region
        $region45: #{tpu_custom_call.1} parent=43 // pred_check
          %p311 = pneg %p40
        $region46: #{tpu_custom_call.1} parent=43 // pred_check_branch
          %313 = sbr.rel (%p311) target = $region48
        $region47: #{tpu_custom_call.1} parent=43 // pred_region
          %s314 = smul.u32 8, %s20
          %p315 = scmp.lt.s32.totalorder %s314, 15
          %s316 = scalar_select %p315, %s314, 15
          %s317 = smul.addr %s316, 2
          %s318 = smul.addr %s317, 8
          %s319 = scalar_lea.vmem %s0, %s318
          %s320 = smul.u32 8, %s20
        $region48: #{tpu_custom_call.1} parent=43 // pred_fallthru
          _
        // Predicated region
        $region49: #{tpu_custom_call.1} parent=43 // pred_check
          %p321 = pneg %p87
        $region50: #{tpu_custom_call.1} parent=43 // pred_check_branch
          %323 = sbr.rel (%p321) target = $region52
        $region51: #{tpu_custom_call.1} parent=43 // pred_region
          %p324 = scmp.lt.s32.totalorder %s20, 1
          %s325 = scalar_select %p324, %s20, 1
          %s326 = smul.addr %s325, 8
          %s327 = scalar_lea.vmem %s2, %s326
        $region52: #{tpu_custom_call.1} parent=43 // pred_fallthru
          _
      $region44: #{tpu_custom_call.1} parent=5 // pred_fallthru
        _
      %p328 = scmp.le.s32.totalorder 1, %s20
      %p329 = scmp.lt.s32.totalorder %s20, 3
      %p330 = pnand %p328, %p329
      %p331 = pneg %p330
      // Predicated region
      $region53: #{tpu_custom_call.1} parent=5 // pred_check
        _
      $region54: #{tpu_custom_call.1} parent=5 // pred_check_branch
        %333 = sbr.rel (%p330) target = $region56
      $region55: #{tpu_custom_call.1} parent=5 // pred_region
        %s334 = ssub.s32 %s20, 1
        %s335 = smul.u32 8, %s25
        %p336 = scmp.lt.s32.totalorder %s335, 15
        %s337 = scalar_select %p336, %s335, 15
        %s338 = smul.addr %s337, 2
        %s339 = smul.addr %s338, 8
        %s340 = scalar_lea.vmem %s0, %s339
        %p341 = pneg %p46
        %p342 = pneg %p43
        %p343 = pneg %p67
        %p344 = pneg %p64
        %p345 = scmp.lt.s32.totalorder %s25, 1
        %s346 = scalar_select %p345, %s25, 1
        %s347 = smul.addr %s346, 8
        %s348 = scalar_lea.vmem %s2, %s347
        %p349 = pneg %p93
        %p350 = pneg %p90
        %p351 = pneg %p114
        %p352 = pneg %p111
        %p353 = pneg %p135
        %p354 = pneg %p132
        %p355 = pneg %p156
        %p356 = pneg %p153
        %p357 = pneg %p177
        %p358 = pneg %p174
        %p359 = pneg %p198
        %p360 = pneg %p195
        %p361 = pneg %p219
        %p362 = pneg %p216
        %p363 = pneg %p245
        %p364 = pneg %p242
        %p365 = scmp.lt.s32.totalorder %s25, 1
        %s366 = scalar_select %p365, %s25, 1
        %s367 = smul.addr %s366, 8
        %s368 = scalar_lea.vmem %s9, %s367
        %p369 = pneg %p271
        %p370 = pneg %p268
        %s371 = sand.u32 %s258, 1
        %s372 = scalar_lea.sflag [#allocation3], %s371
        %s373 = sand.u32 %s258, 1
        %s374 = smul.addr %s373, 8
        %s375 = scalar_lea.vmem [#allocation2], %s374
        %s376 = smul.u32 8, %s25
        %p377 = scmp.lt.s32.totalorder %s376, 15
        %s378 = scalar_select %p377, %s376, 15
        %s379 = smul.addr %s378, 2
        %s380 = smul.addr %s379, 8
        %s381 = scalar_lea.vmem %s0, %s380
        %s382 = smul.u32 8, %s25
        %p383 = scmp.lt.s32.totalorder %s25, 1
        %s384 = scalar_select %p383, %s25, 1
        %s385 = smul.addr %s384, 8
        %s386 = scalar_lea.vmem %s2, %s385
        %p387 = scmp.lt.s32.totalorder %s25, 1
        %s388 = scalar_select %p387, %s25, 1
        %s389 = smul.addr %s388, 8
        %s390 = scalar_lea.vmem %s9, %s389
        %v391 = vld [vmem:[%s3] sm:$0xff]
        %v392 = vld [vmem:[%s4] sm:$0x1]
        %v393 = vld [vmem:[%s5] sm:$0xff]
        %v394 = vld [vmem:[%s5 + $0x8] sm:$0xff]
        %v395 = vld [vmem:[%s6] sm:$0x1]
        %v396 = vld [vmem:[%s7] sm:$0xff]
        %v397 = vld [vmem:[%s7 + $0x8] sm:$0xff]
        %v398 = vld [vmem:[%s8] sm:$0x1]
        %v399 = vld [vmem:[%s381] sm:$0xff]
        %v400 = vld [vmem:[%s381 + $0x8] sm:$0xff]
        %v401 = vld [vmem:[%s381 + $0x10] sm:$0xff]
        %v402 = vld [vmem:[%s381 + $0x18] sm:$0xff]
        %v403 = vld [vmem:[%s381 + $0x20] sm:$0xff]
        %v404 = vld [vmem:[%s381 + $0x28] sm:$0xff]
        %v405 = vld [vmem:[%s381 + $0x30] sm:$0xff]
        %v406 = vld [vmem:[%s381 + $0x38] sm:$0xff]
        %v407 = vld [vmem:[%s381 + $0x40] sm:$0xff]
        %v408 = vld [vmem:[%s381 + $0x48] sm:$0xff]
        %v409 = vld [vmem:[%s381 + $0x50] sm:$0xff]
        %v410 = vld [vmem:[%s381 + $0x58] sm:$0xff]
        %v411 = vld [vmem:[%s381 + $0x60] sm:$0xff]
        %v412 = vld [vmem:[%s381 + $0x68] sm:$0xff]
        %v413 = vld [vmem:[%s381 + $0x70] sm:$0xff]
        %v414 = vld [vmem:[%s381 + $0x78] sm:$0xff]
        %v416 = vlaneseq
        %v417 = vshrl.u32 %v416, 7
        %v418 = vsub.s32 0, %v417
        %v419 = vrot.slane %v392, %v418
        %vm421 = vcmask 64512
        %v423 = vsel %vm421, %v399, 0
        %v426 = vsel %vm421, %v400, 0
        %v429 = vsel %vm421, %v401, 0
        %v432 = vsel %vm421, %v402, 0
        %v435 = vsel %vm421, %v403, 0
        %v438 = vsel %vm421, %v404, 0
        %v441 = vsel %vm421, %v405, 0
        %v444 = vsel %vm421, %v406, 0
        %v447 = vsel %vm421, %v407, 0
        %v450 = vsel %vm421, %v408, 0
        %v453 = vsel %vm421, %v409, 0
        %v456 = vsel %vm421, %v410, 0
        %v459 = vsel %vm421, %v411, 0
        %v462 = vsel %vm421, %v412, 0
        %v465 = vsel %vm421, %v413, 0
        %v468 = vsel %vm421, %v414, 0
        %470 = vmatprep.subr.mxu0 0.0
        %471 = vmatpush1.msra.mxu0 %v391
        %472 = vmatprep.subr.mxu0 0.0
        %473 = vmatpush1.msra.mxu0 0.0
        %474 = vmatprep.subr.mxu0 0.0
        %475 = vmatpush1.msra.mxu0 0.0
        %476 = vmatprep.subr.mxu0 0.0
        %477 = vmatpush1.msra.mxu0 0.0
        %478 = vmatprep.subr.mxu0 0.0
        %479 = vmatpush1.msra.mxu0 0.0
        %480 = vmatprep.subr.mxu0 0.0
        %481 = vmatpush1.msra.mxu0 0.0
        %482 = vmatprep.subr.mxu0 0.0
        %483 = vmatpush1.msra.mxu0 0.0
        %484 = vmatprep.subr.mxu0 0.0
        %485 = vmatpush1.msra.mxu0 0.0
        %486 = vmatprep.subr.mxu0 0.0
        %487 = vmatpush1.msra.mxu0 0.0
        %488 = vmatprep.subr.mxu0 0.0
        %489 = vmatpush1.msra.mxu0 0.0
        %490 = vmatprep.subr.mxu0 0.0
        %491 = vmatpush1.msra.mxu0 0.0
        %492 = vmatprep.subr.mxu0 0.0
        %493 = vmatpush1.msra.mxu0 0.0
        %494 = vmatprep.subr.mxu0 0.0
        %495 = vmatpush1.msra.mxu0 0.0
        %496 = vmatprep.subr.mxu0 0.0
        %497 = vmatpush1.msra.mxu0 0.0
        %498 = vmatprep.subr.mxu0 0.0
        %499 = vmatpush1.msra.mxu0 0.0
        %500 = vmatprep.subr.mxu0 0.0
        %501 = vmatpush1.msra.mxu0 0.0
        %502 = vmatprep.subr.mxu0 0.0
        %503 = vmatpush1.msra.mxu0 0.0
        %504 = vmatprep.subr.mxu0 0.0
        %505 = vmatpush1.msra.mxu0 0.0
        %506 = vmatprep.subr.mxu0 0.0
        %507 = vmatpush1.msra.mxu0 0.0
        %508 = vmatprep.subr.mxu0 0.0
        %509 = vmatpush1.msra.mxu0 0.0
        %510 = vmatprep.subr.mxu0 0.0
        %511 = vmatpush1.msra.mxu0 0.0
        %512 = vmatprep.subr.mxu0 0.0
        %513 = vmatpush1.msra.mxu0 0.0
        %514 = vmatprep.subr.mxu0 0.0
        %515 = vmatpush1.msra.mxu0 0.0
        %516 = vmatprep.subr.mxu0 0.0
        %517 = vmatpush1.msra.mxu0 0.0
        %518 = vmatprep.subr.mxu0 0.0
        %519 = vmatpush1.msra.mxu0 0.0
        %520 = vmatprep.subr.mxu0 0.0
        %521 = vmatpush1.msra.mxu0 0.0
        %522 = vmatprep.subr.mxu0 0.0
        %523 = vmatpush1.msra.mxu0 0.0
        %524 = vmatprep.subr.mxu0 0.0
        %525 = vmatpush1.msra.mxu0 0.0
        %526 = vmatprep.subr.mxu0 0.0
        %527 = vmatpush1.msra.mxu0 0.0
        %528 = vmatprep.subr.mxu0 0.0
        %529 = vmatpush1.msra.mxu0 0.0
        %530 = vmatprep.subr.mxu0 0.0
        %531 = vmatpush1.msra.mxu0 0.0
        %532 = vmatprep.subr.mxu0 0.0
        %533 = vmatpush1.msra.mxu0 0.0
        %534 = vmatprep.mubr.f32.mxu0 0.0
        %535 = vmatmul.mubr.f32.gmra.mrb[0].mxu0 %v423
        %v536 = vpop.f32.mrb[0].mxu0
        %v537 = vadd.f32 %v419, %v536
        %v538 = vpop.f32.mrb[0].mxu0
        %539 = vmatprep.mubr.f32.mxu0 0.0
        %540 = vmatmul.mubr.f32.gmra.mrb[0].mxu0 %v426
        %v541 = vpop.f32.mrb[0].mxu0
        %v542 = vadd.f32 %v419, %v541
        %v543 = vpop.f32.mrb[0].mxu0
        %544 = vmatprep.mubr.f32.mxu0 0.0
        %545 = vmatmul.mubr.f32.gmra.mrb[0].mxu0 %v429
        %v546 = vpop.f32.mrb[0].mxu0
        %v547 = vadd.f32 %v419, %v546
        %v548 = vpop.f32.mrb[0].mxu0
        %549 = vmatprep.mubr.f32.mxu0 0.0
        %550 = vmatmul.mubr.f32.gmra.mrb[0].mxu0 %v432
        %v551 = vpop.f32.mrb[0].mxu0
        %v552 = vadd.f32 %v419, %v551
        %v553 = vpop.f32.mrb[0].mxu0
        %554 = vmatprep.mubr.f32.mxu0 0.0
        %555 = vmatmul.mubr.f32.gmra.mrb[0].mxu0 %v435
        %v556 = vpop.f32.mrb[0].mxu0
        %v557 = vadd.f32 %v419, %v556
        %v558 = vpop.f32.mrb[0].mxu0
        %559 = vmatprep.mubr.f32.mxu0 0.0
        %560 = vmatmul.mubr.f32.gmra.mrb[0].mxu0 %v438
        %v561 = vpop.f32.mrb[0].mxu0
        %v562 = vadd.f32 %v419, %v561
        %v563 = vpop.f32.mrb[0].mxu0
        %564 = vmatprep.mubr.f32.mxu0 0.0
        %565 = vmatmul.mubr.f32.gmra.mrb[0].mxu0 %v441
        %v566 = vpop.f32.mrb[0].mxu0
        %v567 = vadd.f32 %v419, %v566
        %v568 = vpop.f32.mrb[0].mxu0
        %569 = vmatprep.mubr.f32.mxu0 0.0
        %570 = vmatmul.mubr.f32.gmra.mrb[0].mxu0 %v444
        %v571 = vpop.f32.mrb[0].mxu0
        %v572 = vadd.f32 %v419, %v571
        %v573 = vpop.f32.mrb[0].mxu0
        %574 = vmatprep.mubr.f32.mxu0 0.0
        %575 = vmatmul.mubr.f32.gmra.mrb[0].mxu0 %v447
        %v576 = vpop.f32.mrb[0].mxu0
        %v577 = vadd.f32 %v419, %v576
        %v578 = vpop.f32.mrb[0].mxu0
        %579 = vmatprep.mubr.f32.mxu0 0.0
        %580 = vmatmul.mubr.f32.gmra.mrb[0].mxu0 %v450
        %v581 = vpop.f32.mrb[0].mxu0
        %v582 = vadd.f32 %v419, %v581
        %v583 = vpop.f32.mrb[0].mxu0
        %584 = vmatprep.mubr.f32.mxu0 0.0
        %585 = vmatmul.mubr.f32.gmra.mrb[0].mxu0 %v453
        %v586 = vpop.f32.mrb[0].mxu0
        %v587 = vadd.f32 %v419, %v586
        %v588 = vpop.f32.mrb[0].mxu0
        %589 = vmatprep.mubr.f32.mxu0 0.0
        %590 = vmatmul.mubr.f32.gmra.mrb[0].mxu0 %v456
        %v591 = vpop.f32.mrb[0].mxu0
        %v592 = vadd.f32 %v419, %v591
        %v593 = vpop.f32.mrb[0].mxu0
        %594 = vmatprep.mubr.f32.mxu0 0.0
        %595 = vmatmul.mubr.f32.gmra.mrb[0].mxu0 %v459
        %v596 = vpop.f32.mrb[0].mxu0
        %v597 = vadd.f32 %v419, %v596
        %v598 = vpop.f32.mrb[0].mxu0
        %599 = vmatprep.mubr.f32.mxu0 0.0
        %600 = vmatmul.mubr.f32.gmra.mrb[0].mxu0 %v462
        %v601 = vpop.f32.mrb[0].mxu0
        %v602 = vadd.f32 %v419, %v601
        %v603 = vpop.f32.mrb[0].mxu0
        %604 = vmatprep.mubr.f32.mxu0 0.0
        %605 = vmatmul.mubr.f32.gmra.mrb[0].mxu0 %v465
        %v606 = vpop.f32.mrb[0].mxu0
        %v607 = vadd.f32 %v419, %v606
        %v608 = vpop.f32.mrb[0].mxu0
        %609 = vmatprep.mubr.f32.mxu0 0.0
        %610 = vmatmul.mubr.f32.gmra.mrb[0].mxu0 %v468
        %v611 = vpop.f32.mrb[0].mxu0
        %v612 = vadd.f32 %v419, %v611
        %v613 = vpop.f32.mrb[0].mxu0
        %614 = vdwg.mxu0
        %v615 = vtanh.pop %v537
        %v616 = vtanh.pop %v542
        %v617 = vtanh.pop %v547
        %v618 = vtanh.pop %v552
        %v619 = vtanh.pop %v557
        %v620 = vtanh.pop %v562
        %v621 = vtanh.pop %v567
        %v622 = vtanh.pop %v572
        %v623 = vtanh.pop %v577
        %v624 = vtanh.pop %v582
        %v625 = vtanh.pop %v587
        %v626 = vtanh.pop %v592
        %v627 = vtanh.pop %v597
        %v628 = vtanh.pop %v602
        %v629 = vtanh.pop %v607
        %v630 = vtanh.pop %v612
        %v632 = vlaneseq
        %v633 = vshrl.u32 %v632, 7
        %v634 = vsub.s32 0, %v633
        %v635 = vrot.slane %v395, %v634
        %vm637 = vcmask 130048
        %v639 = vsel %vm637, %v615, 0
        %v642 = vsel %vm637, %v616, 0
        %v645 = vsel %vm637, %v617, 0
        %v648 = vsel %vm637, %v618, 0
        %v651 = vsel %vm637, %v619, 0
        %v654 = vsel %vm637, %v620, 0
        %v657 = vsel %vm637, %v621, 0
        %v660 = vsel %vm637, %v622, 0
        %v663 = vsel %vm637, %v623, 0
        %v666 = vsel %vm637, %v624, 0
        %v669 = vsel %vm637, %v625, 0
        %v672 = vsel %vm637, %v626, 0
        %v675 = vsel %vm637, %v627, 0
        %v678 = vsel %vm637, %v628, 0
        %v681 = vsel %vm637, %v629, 0
        %v684 = vsel %vm637, %v630, 0
        %686 = vmatprep.subr.mxu0 0.0
        %687 = vmatpush1.msra.mxu0 %v393
        %688 = vmatprep.subr.mxu0 0.0
        %689 = vmatpush1.msra.mxu0 %v394
        %690 = vmatprep.subr.mxu0 0.0
        %691 = vmatpush1.msra.mxu0 0.0
        %692 = vmatprep.subr.mxu0 0.0
        %693 = vmatpush1.msra.mxu0 0.0
        %694 = vmatprep.subr.mxu0 0.0
        %695 = vmatpush1.msra.mxu0 0.0
        %696 = vmatprep.subr.mxu0 0.0
        %697 = vmatpush1.msra.mxu0 0.0
        %698 = vmatprep.subr.mxu0 0.0
        %699 = vmatpush1.msra.mxu0 0.0
        %700 = vmatprep.subr.mxu0 0.0
        %701 = vmatpush1.msra.mxu0 0.0
        %702 = vmatprep.subr.mxu0 0.0
        %703 = vmatpush1.msra.mxu0 0.0
        %704 = vmatprep.subr.mxu0 0.0
        %705 = vmatpush1.msra.mxu0 0.0
        %706 = vmatprep.subr.mxu0 0.0
        %707 = vmatpush1.msra.mxu0 0.0
        %708 = vmatprep.subr.mxu0 0.0
        %709 = vmatpush1.msra.mxu0 0.0
        %710 = vmatprep.subr.mxu0 0.0
        %711 = vmatpush1.msra.mxu0 0.0
        %712 = vmatprep.subr.mxu0 0.0
        %713 = vmatpush1.msra.mxu0 0.0
        %714 = vmatprep.subr.mxu0 0.0
        %715 = vmatpush1.msra.mxu0 0.0
        %716 = vmatprep.subr.mxu0 0.0
        %717 = vmatpush1.msra.mxu0 0.0
        %718 = vmatprep.subr.mxu0 0.0
        %719 = vmatpush1.msra.mxu0 0.0
        %720 = vmatprep.subr.mxu0 0.0
        %721 = vmatpush1.msra.mxu0 0.0
        %722 = vmatprep.subr.mxu0 0.0
        %723 = vmatpush1.msra.mxu0 0.0
        %724 = vmatprep.subr.mxu0 0.0
        %725 = vmatpush1.msra.mxu0 0.0
        %726 = vmatprep.subr.mxu0 0.0
        %727 = vmatpush1.msra.mxu0 0.0
        %728 = vmatprep.subr.mxu0 0.0
        %729 = vmatpush1.msra.mxu0 0.0
        %730 = vmatprep.subr.mxu0 0.0
        %731 = vmatpush1.msra.mxu0 0.0
        %732 = vmatprep.subr.mxu0 0.0
        %733 = vmatpush1.msra.mxu0 0.0
        %734 = vmatprep.subr.mxu0 0.0
        %735 = vmatpush1.msra.mxu0 0.0
        %736 = vmatprep.subr.mxu0 0.0
        %737 = vmatpush1.msra.mxu0 0.0
        %738 = vmatprep.subr.mxu0 0.0
        %739 = vmatpush1.msra.mxu0 0.0
        %740 = vmatprep.subr.mxu0 0.0
        %741 = vmatpush1.msra.mxu0 0.0
        %742 = vmatprep.subr.mxu0 0.0
        %743 = vmatpush1.msra.mxu0 0.0
        %744 = vmatprep.subr.mxu0 0.0
        %745 = vmatpush1.msra.mxu0 0.0
        %746 = vmatprep.subr.mxu0 0.0
        %747 = vmatpush1.msra.mxu0 0.0
        %748 = vmatprep.subr.mxu0 0.0
        %749 = vmatpush1.msra.mxu0 0.0
        %750 = vmatprep.mubr.f32.mxu0 0.0
        %751 = vmatmul.mubr.f32.gmra.mrb[0].mxu0 %v639
        %v752 = vpop.f32.mrb[0].mxu0
        %v753 = vadd.f32 %v635, %v752
        %v754 = vpop.f32.mrb[0].mxu0
        %755 = vmatprep.mubr.f32.mxu0 0.0
        %756 = vmatmul.mubr.f32.gmra.mrb[0].mxu0 %v642
        %v757 = vpop.f32.mrb[0].mxu0
        %v758 = vadd.f32 %v635, %v757
        %v759 = vpop.f32.mrb[0].mxu0
        %760 = vmatprep.mubr.f32.mxu0 0.0
        %761 = vmatmul.mubr.f32.gmra.mrb[0].mxu0 %v645
        %v762 = vpop.f32.mrb[0].mxu0
        %v763 = vadd.f32 %v635, %v762
        %v764 = vpop.f32.mrb[0].mxu0
        %765 = vmatprep.mubr.f32.mxu0 0.0
        %766 = vmatmul.mubr.f32.gmra.mrb[0].mxu0 %v648
        %v767 = vpop.f32.mrb[0].mxu0
        %v768 = vadd.f32 %v635, %v767
        %v769 = vpop.f32.mrb[0].mxu0
        %770 = vmatprep.mubr.f32.mxu0 0.0
        %771 = vmatmul.mubr.f32.gmra.mrb[0].mxu0 %v651
        %v772 = vpop.f32.mrb[0].mxu0
        %v773 = vadd.f32 %v635, %v772
        %v774 = vpop.f32.mrb[0].mxu0
        %775 = vmatprep.mubr.f32.mxu0 0.0
        %776 = vmatmul.mubr.f32.gmra.mrb[0].mxu0 %v654
        %v777 = vpop.f32.mrb[0].mxu0
        %v778 = vadd.f32 %v635, %v777
        %v779 = vpop.f32.mrb[0].mxu0
        %780 = vmatprep.mubr.f32.mxu0 0.0
        %781 = vmatmul.mubr.f32.gmra.mrb[0].mxu0 %v657
        %v782 = vpop.f32.mrb[0].mxu0
        %v783 = vadd.f32 %v635, %v782
        %v784 = vpop.f32.mrb[0].mxu0
        %785 = vmatprep.mubr.f32.mxu0 0.0
        %786 = vmatmul.mubr.f32.gmra.mrb[0].mxu0 %v660
        %v787 = vpop.f32.mrb[0].mxu0
        %v788 = vadd.f32 %v635, %v787
        %v789 = vpop.f32.mrb[0].mxu0
        %790 = vmatprep.mubr.f32.mxu0 0.0
        %791 = vmatmul.mubr.f32.gmra.mrb[0].mxu0 %v663
        %v792 = vpop.f32.mrb[0].mxu0
        %v793 = vadd.f32 %v635, %v792
        %v794 = vpop.f32.mrb[0].mxu0
        %795 = vmatprep.mubr.f32.mxu0 0.0
        %796 = vmatmul.mubr.f32.gmra.mrb[0].mxu0 %v666
        %v797 = vpop.f32.mrb[0].mxu0
        %v798 = vadd.f32 %v635, %v797
        %v799 = vpop.f32.mrb[0].mxu0
        %800 = vmatprep.mubr.f32.mxu0 0.0
        %801 = vmatmul.mubr.f32.gmra.mrb[0].mxu0 %v669
        %v802 = vpop.f32.mrb[0].mxu0
        %v803 = vadd.f32 %v635, %v802
        %v804 = vpop.f32.mrb[0].mxu0
        %805 = vmatprep.mubr.f32.mxu0 0.0
        %806 = vmatmul.mubr.f32.gmra.mrb[0].mxu0 %v672
        %v807 = vpop.f32.mrb[0].mxu0
        %v808 = vadd.f32 %v635, %v807
        %v809 = vpop.f32.mrb[0].mxu0
        %810 = vmatprep.mubr.f32.mxu0 0.0
        %811 = vmatmul.mubr.f32.gmra.mrb[0].mxu0 %v675
        %v812 = vpop.f32.mrb[0].mxu0
        %v813 = vadd.f32 %v635, %v812
        %v814 = vpop.f32.mrb[0].mxu0
        %815 = vmatprep.mubr.f32.mxu0 0.0
        %816 = vmatmul.mubr.f32.gmra.mrb[0].mxu0 %v678
        %v817 = vpop.f32.mrb[0].mxu0
        %v818 = vadd.f32 %v635, %v817
        %v819 = vpop.f32.mrb[0].mxu0
        %820 = vmatprep.mubr.f32.mxu0 0.0
        %821 = vmatmul.mubr.f32.gmra.mrb[0].mxu0 %v681
        %v822 = vpop.f32.mrb[0].mxu0
        %v823 = vadd.f32 %v635, %v822
        %v824 = vpop.f32.mrb[0].mxu0
        %825 = vmatprep.mubr.f32.mxu0 0.0
        %826 = vmatmul.mubr.f32.gmra.mrb[0].mxu0 %v684
        %v827 = vpop.f32.mrb[0].mxu0
        %v828 = vadd.f32 %v635, %v827
        %v829 = vpop.f32.mrb[0].mxu0
        %830 = vdwg.mxu0
        %v831 = vtanh.pop %v753
        %v832 = vtanh.pop %v758
        %v833 = vtanh.pop %v763
        %v834 = vtanh.pop %v768
        %v835 = vtanh.pop %v773
        %v836 = vtanh.pop %v778
        %v837 = vtanh.pop %v783
        %v838 = vtanh.pop %v788
        %v839 = vtanh.pop %v793
        %v840 = vtanh.pop %v798
        %v841 = vtanh.pop %v803
        %v842 = vtanh.pop %v808
        %v843 = vtanh.pop %v813
        %v844 = vtanh.pop %v818
        %v845 = vtanh.pop %v823
        %v846 = vtanh.pop %v828
        %v848 = vlaneseq
        %v849 = vshrl.u32 %v848, 7
        %v850 = vsub.s32 0, %v849
        %v851 = vrot.slane %v398, %v850
        %v854 = vsel %vm637, %v831, 0
        %v857 = vsel %vm637, %v832, 0
        %v860 = vsel %vm637, %v833, 0
        %v863 = vsel %vm637, %v834, 0
        %v866 = vsel %vm637, %v835, 0
        %v869 = vsel %vm637, %v836, 0
        %v872 = vsel %vm637, %v837, 0
        %v875 = vsel %vm637, %v838, 0
        %v878 = vsel %vm637, %v839, 0
        %v881 = vsel %vm637, %v840, 0
        %v884 = vsel %vm637, %v841, 0
        %v887 = vsel %vm637, %v842, 0
        %v890 = vsel %vm637, %v843, 0
        %v893 = vsel %vm637, %v844, 0
        %v896 = vsel %vm637, %v845, 0
        %v899 = vsel %vm637, %v846, 0
        %901 = vmatprep.subr.mxu0 0.0
        %902 = vmatpush1.msra.mxu0 %v396
        %903 = vmatprep.subr.mxu0 0.0
        %904 = vmatpush1.msra.mxu0 %v397
        %905 = vmatprep.subr.mxu0 0.0
        %906 = vmatpush1.msra.mxu0 0.0
        %907 = vmatprep.subr.mxu0 0.0
        %908 = vmatpush1.msra.mxu0 0.0
        %909 = vmatprep.subr.mxu0 0.0
        %910 = vmatpush1.msra.mxu0 0.0
        %911 = vmatprep.subr.mxu0 0.0
        %912 = vmatpush1.msra.mxu0 0.0
        %913 = vmatprep.subr.mxu0 0.0
        %914 = vmatpush1.msra.mxu0 0.0
        %915 = vmatprep.subr.mxu0 0.0
        %916 = vmatpush1.msra.mxu0 0.0
        %917 = vmatprep.subr.mxu0 0.0
        %918 = vmatpush1.msra.mxu0 0.0
        %919 = vmatprep.subr.mxu0 0.0
        %920 = vmatpush1.msra.mxu0 0.0
        %921 = vmatprep.subr.mxu0 0.0
        %922 = vmatpush1.msra.mxu0 0.0
        %923 = vmatprep.subr.mxu0 0.0
        %924 = vmatpush1.msra.mxu0 0.0
        %925 = vmatprep.subr.mxu0 0.0
        %926 = vmatpush1.msra.mxu0 0.0
        %927 = vmatprep.subr.mxu0 0.0
        %928 = vmatpush1.msra.mxu0 0.0
        %929 = vmatprep.subr.mxu0 0.0
        %930 = vmatpush1.msra.mxu0 0.0
        %931 = vmatprep.subr.mxu0 0.0
        %932 = vmatpush1.msra.mxu0 0.0
        %933 = vmatprep.subr.mxu0 0.0
        %934 = vmatpush1.msra.mxu0 0.0
        %935 = vmatprep.subr.mxu0 0.0
        %936 = vmatpush1.msra.mxu0 0.0
        %937 = vmatprep.subr.mxu0 0.0
        %938 = vmatpush1.msra.mxu0 0.0
        %939 = vmatprep.subr.mxu0 0.0
        %940 = vmatpush1.msra.mxu0 0.0
        %941 = vmatprep.subr.mxu0 0.0
        %942 = vmatpush1.msra.mxu0 0.0
        %943 = vmatprep.subr.mxu0 0.0
        %944 = vmatpush1.msra.mxu0 0.0
        %945 = vmatprep.subr.mxu0 0.0
        %946 = vmatpush1.msra.mxu0 0.0
        %947 = vmatprep.subr.mxu0 0.0
        %948 = vmatpush1.msra.mxu0 0.0
        %949 = vmatprep.subr.mxu0 0.0
        %950 = vmatpush1.msra.mxu0 0.0
        %951 = vmatprep.subr.mxu0 0.0
        %952 = vmatpush1.msra.mxu0 0.0
        %953 = vmatprep.subr.mxu0 0.0
        %954 = vmatpush1.msra.mxu0 0.0
        %955 = vmatprep.subr.mxu0 0.0
        %956 = vmatpush1.msra.mxu0 0.0
        %957 = vmatprep.subr.mxu0 0.0
        %958 = vmatpush1.msra.mxu0 0.0
        %959 = vmatprep.subr.mxu0 0.0
        %960 = vmatpush1.msra.mxu0 0.0
        %961 = vmatprep.subr.mxu0 0.0
        %962 = vmatpush1.msra.mxu0 0.0
        %963 = vmatprep.subr.mxu0 0.0
        %964 = vmatpush1.msra.mxu0 0.0
        %965 = vmatprep.mubr.f32.mxu0 0.0
        %966 = vmatmul.mubr.f32.gmra.mrb[0].mxu0 %v854
        %v967 = vpop.f32.mrb[0].mxu0
        %v968 = vadd.f32 %v851, %v967
        %v969 = vpop.f32.mrb[0].mxu0
        %970 = vmatprep.mubr.f32.mxu0 0.0
        %971 = vmatmul.mubr.f32.gmra.mrb[0].mxu0 %v857
        %v972 = vpop.f32.mrb[0].mxu0
        %v973 = vadd.f32 %v851, %v972
        %v974 = vpop.f32.mrb[0].mxu0
        %975 = vmatprep.mubr.f32.mxu0 0.0
        %976 = vmatmul.mubr.f32.gmra.mrb[0].mxu0 %v860
        %v977 = vpop.f32.mrb[0].mxu0
        %v978 = vadd.f32 %v851, %v977
        %v979 = vpop.f32.mrb[0].mxu0
        %980 = vmatprep.mubr.f32.mxu0 0.0
        %981 = vmatmul.mubr.f32.gmra.mrb[0].mxu0 %v863
        %v982 = vpop.f32.mrb[0].mxu0
        %v983 = vadd.f32 %v851, %v982
        %v984 = vpop.f32.mrb[0].mxu0
        %985 = vmatprep.mubr.f32.mxu0 0.0
        %986 = vmatmul.mubr.f32.gmra.mrb[0].mxu0 %v866
        %v987 = vpop.f32.mrb[0].mxu0
        %v988 = vadd.f32 %v851, %v987
        %v989 = vpop.f32.mrb[0].mxu0
        %990 = vmatprep.mubr.f32.mxu0 0.0
        %991 = vmatmul.mubr.f32.gmra.mrb[0].mxu0 %v869
        %v992 = vpop.f32.mrb[0].mxu0
        %v993 = vadd.f32 %v851, %v992
        %v994 = vpop.f32.mrb[0].mxu0
        %995 = vmatprep.mubr.f32.mxu0 0.0
        %996 = vmatmul.mubr.f32.gmra.mrb[0].mxu0 %v872
        %v997 = vpop.f32.mrb[0].mxu0
        %v998 = vadd.f32 %v851, %v997
        %v999 = vpop.f32.mrb[0].mxu0
        %1000 = vmatprep.mubr.f32.mxu0 0.0
        %1001 = vmatmul.mubr.f32.gmra.mrb[0].mxu0 %v875
        %v1002 = vpop.f32.mrb[0].mxu0
        %v1003 = vadd.f32 %v851, %v1002
        %v1004 = vpop.f32.mrb[0].mxu0
        %1005 = vmatprep.mubr.f32.mxu0 0.0
        %1006 = vmatmul.mubr.f32.gmra.mrb[0].mxu0 %v878
        %v1007 = vpop.f32.mrb[0].mxu0
        %v1008 = vadd.f32 %v851, %v1007
        %v1009 = vpop.f32.mrb[0].mxu0
        %1010 = vmatprep.mubr.f32.mxu0 0.0
        %1011 = vmatmul.mubr.f32.gmra.mrb[0].mxu0 %v881
        %v1012 = vpop.f32.mrb[0].mxu0
        %v1013 = vadd.f32 %v851, %v1012
        %v1014 = vpop.f32.mrb[0].mxu0
        %1015 = vmatprep.mubr.f32.mxu0 0.0
        %1016 = vmatmul.mubr.f32.gmra.mrb[0].mxu0 %v884
        %v1017 = vpop.f32.mrb[0].mxu0
        %v1018 = vadd.f32 %v851, %v1017
        %v1019 = vpop.f32.mrb[0].mxu0
        %1020 = vmatprep.mubr.f32.mxu0 0.0
        %1021 = vmatmul.mubr.f32.gmra.mrb[0].mxu0 %v887
        %v1022 = vpop.f32.mrb[0].mxu0
        %v1023 = vadd.f32 %v851, %v1022
        %v1024 = vpop.f32.mrb[0].mxu0
        %1025 = vmatprep.mubr.f32.mxu0 0.0
        %1026 = vmatmul.mubr.f32.gmra.mrb[0].mxu0 %v890
        %v1027 = vpop.f32.mrb[0].mxu0
        %v1028 = vadd.f32 %v851, %v1027
        %v1029 = vpop.f32.mrb[0].mxu0
        %1030 = vmatprep.mubr.f32.mxu0 0.0
        %1031 = vmatmul.mubr.f32.gmra.mrb[0].mxu0 %v893
        %v1032 = vpop.f32.mrb[0].mxu0
        %v1033 = vadd.f32 %v851, %v1032
        %v1034 = vpop.f32.mrb[0].mxu0
        %1035 = vmatprep.mubr.f32.mxu0 0.0
        %1036 = vmatmul.mubr.f32.gmra.mrb[0].mxu0 %v896
        %v1037 = vpop.f32.mrb[0].mxu0
        %v1038 = vadd.f32 %v851, %v1037
        %v1039 = vpop.f32.mrb[0].mxu0
        %1040 = vmatprep.mubr.f32.mxu0 0.0
        %1041 = vmatmul.mubr.f32.gmra.mrb[0].mxu0 %v899
        %v1042 = vpop.f32.mrb[0].mxu0
        %v1043 = vadd.f32 %v851, %v1042
        %v1044 = vpop.f32.mrb[0].mxu0
        %1045 = vdwg.mxu0
        %v1046 = vtanh.pop %v968
        %v1047 = vtanh.pop %v973
        %v1048 = vtanh.pop %v978
        %v1049 = vtanh.pop %v983
        %v1050 = vtanh.pop %v988
        %v1051 = vtanh.pop %v993
        %v1052 = vtanh.pop %v998
        %v1053 = vtanh.pop %v1003
        %v1054 = vtanh.pop %v1008
        %v1055 = vtanh.pop %v1013
        %v1056 = vtanh.pop %v1018
        %v1057 = vtanh.pop %v1023
        %v1058 = vtanh.pop %v1028
        %v1059 = vtanh.pop %v1033
        %v1060 = vtanh.pop %v1038
        %v1061 = vtanh.pop %v1043
        %v1062 = vsel %vm421, %v1046, 0.0
        %v1063 = vsel %vm421, %v1047, 0.0
        %v1064 = vadd.f32 %v1062, %v1063
        %v1065 = vrot.slane %v1064, 4
        %v1066 = vadd.f32 %v1064, %v1065
        %v1067 = vrot.slane %v1066, 2
        %v1068 = vadd.f32 %v1066, %v1067
        %v1069 = vrot.slane %v1068, 1
        %v1070 = vadd.f32 %v1068, %v1069
        %v1071 = vsel %vm421, %v1048, 0.0
        %v1072 = vsel %vm421, %v1049, 0.0
        %v1073 = vadd.f32 %v1071, %v1072
        %v1074 = vrot.slane %v1073, 4
        %v1075 = vadd.f32 %v1073, %v1074
        %v1076 = vrot.slane %v1075, 2
        %v1077 = vadd.f32 %v1075, %v1076
        %v1078 = vrot.slane %v1077, 1
        %v1079 = vadd.f32 %v1077, %v1078
        %v1080 = vsel %vm421, %v1050, 0.0
        %v1081 = vsel %vm421, %v1051, 0.0
        %v1082 = vadd.f32 %v1080, %v1081
        %v1083 = vrot.slane %v1082, 4
        %v1084 = vadd.f32 %v1082, %v1083
        %v1085 = vrot.slane %v1084, 2
        %v1086 = vadd.f32 %v1084, %v1085
        %v1087 = vrot.slane %v1086, 1
        %v1088 = vadd.f32 %v1086, %v1087
        %v1089 = vsel %vm421, %v1052, 0.0
        %v1090 = vsel %vm421, %v1053, 0.0
        %v1091 = vadd.f32 %v1089, %v1090
        %v1092 = vrot.slane %v1091, 4
        %v1093 = vadd.f32 %v1091, %v1092
        %v1094 = vrot.slane %v1093, 2
        %v1095 = vadd.f32 %v1093, %v1094
        %v1096 = vrot.slane %v1095, 1
        %v1097 = vadd.f32 %v1095, %v1096
        %v1098 = vsel %vm421, %v1054, 0.0
        %v1099 = vsel %vm421, %v1055, 0.0
        %v1100 = vadd.f32 %v1098, %v1099
        %v1101 = vrot.slane %v1100, 4
        %v1102 = vadd.f32 %v1100, %v1101
        %v1103 = vrot.slane %v1102, 2
        %v1104 = vadd.f32 %v1102, %v1103
        %v1105 = vrot.slane %v1104, 1
        %v1106 = vadd.f32 %v1104, %v1105
        %v1107 = vsel %vm421, %v1056, 0.0
        %v1108 = vsel %vm421, %v1057, 0.0
        %v1109 = vadd.f32 %v1107, %v1108
        %v1110 = vrot.slane %v1109, 4
        %v1111 = vadd.f32 %v1109, %v1110
        %v1112 = vrot.slane %v1111, 2
        %v1113 = vadd.f32 %v1111, %v1112
        %v1114 = vrot.slane %v1113, 1
        %v1115 = vadd.f32 %v1113, %v1114
        %v1116 = vsel %vm421, %v1058, 0.0
        %v1117 = vsel %vm421, %v1059, 0.0
        %v1118 = vadd.f32 %v1116, %v1117
        %v1119 = vrot.slane %v1118, 4
        %v1120 = vadd.f32 %v1118, %v1119
        %v1121 = vrot.slane %v1120, 2
        %v1122 = vadd.f32 %v1120, %v1121
        %v1123 = vrot.slane %v1122, 1
        %v1124 = vadd.f32 %v1122, %v1123
        %v1125 = vsel %vm421, %v1060, 0.0
        %v1126 = vsel %vm421, %v1061, 0.0
        %v1127 = vadd.f32 %v1125, %v1126
        %v1128 = vrot.slane %v1127, 4
        %v1129 = vadd.f32 %v1127, %v1128
        %v1130 = vrot.slane %v1129, 2
        %v1131 = vadd.f32 %v1129, %v1130
        %v1132 = vrot.slane %v1131, 1
        %v1133 = vadd.f32 %v1131, %v1132
        %v1134 = vrcp.pop 16.0
        %v1135 = vmul.f32 %v1070, %v1134
        %v1136 = vmul.f32 %v1079, %v1134
        %v1137 = vmul.f32 %v1088, %v1134
        %v1138 = vmul.f32 %v1097, %v1134
        %v1139 = vmul.f32 %v1106, %v1134
        %v1140 = vmul.f32 %v1115, %v1134
        %v1141 = vmul.f32 %v1124, %v1134
        %v1142 = vmul.f32 %v1133, %v1134
        %v1143 = vsub.f32 %v1046, %v1135
        %v1144 = vsub.f32 %v1047, %v1135
        %v1145 = vsub.f32 %v1048, %v1136
        %v1146 = vsub.f32 %v1049, %v1136
        %v1147 = vsub.f32 %v1050, %v1137
        %v1148 = vsub.f32 %v1051, %v1137
        %v1149 = vsub.f32 %v1052, %v1138
        %v1150 = vsub.f32 %v1053, %v1138
        %v1151 = vsub.f32 %v1054, %v1139
        %v1152 = vsub.f32 %v1055, %v1139
        %v1153 = vsub.f32 %v1056, %v1140
        %v1154 = vsub.f32 %v1057, %v1140
        %v1155 = vsub.f32 %v1058, %v1141
        %v1156 = vsub.f32 %v1059, %v1141
        %v1157 = vsub.f32 %v1060, %v1142
        %v1158 = vsub.f32 %v1061, %v1142
        %v1159 = vmul.f32 %v1143, %v1143
        %v1160 = vmul.f32 %v1144, %v1144
        %v1161 = vmul.f32 %v1145, %v1145
        %v1162 = vmul.f32 %v1146, %v1146
        %v1163 = vmul.f32 %v1147, %v1147
        %v1164 = vmul.f32 %v1148, %v1148
        %v1165 = vmul.f32 %v1149, %v1149
        %v1166 = vmul.f32 %v1150, %v1150
        %v1167 = vmul.f32 %v1151, %v1151
        %v1168 = vmul.f32 %v1152, %v1152
        %v1169 = vmul.f32 %v1153, %v1153
        %v1170 = vmul.f32 %v1154, %v1154
        %v1171 = vmul.f32 %v1155, %v1155
        %v1172 = vmul.f32 %v1156, %v1156
        %v1173 = vmul.f32 %v1157, %v1157
        %v1174 = vmul.f32 %v1158, %v1158
        %v1175 = vsel %vm421, %v1159, 0.0
        %v1176 = vsel %vm421, %v1160, 0.0
        %v1177 = vadd.f32 %v1175, %v1176
        %v1178 = vrot.slane %v1177, 4
        %v1179 = vadd.f32 %v1177, %v1178
        %v1180 = vrot.slane %v1179, 2
        %v1181 = vadd.f32 %v1179, %v1180
        %v1182 = vrot.slane %v1181, 1
        %v1183 = vadd.f32 %v1181, %v1182
        %v1184 = vsel %vm421, %v1161, 0.0
        %v1185 = vsel %vm421, %v1162, 0.0
        %v1186 = vadd.f32 %v1184, %v1185
        %v1187 = vrot.slane %v1186, 4
        %v1188 = vadd.f32 %v1186, %v1187
        %v1189 = vrot.slane %v1188, 2
        %v1190 = vadd.f32 %v1188, %v1189
        %v1191 = vrot.slane %v1190, 1
        %v1192 = vadd.f32 %v1190, %v1191
        %v1193 = vsel %vm421, %v1163, 0.0
        %v1194 = vsel %vm421, %v1164, 0.0
        %v1195 = vadd.f32 %v1193, %v1194
        %v1196 = vrot.slane %v1195, 4
        %v1197 = vadd.f32 %v1195, %v1196
        %v1198 = vrot.slane %v1197, 2
        %v1199 = vadd.f32 %v1197, %v1198
        %v1200 = vrot.slane %v1199, 1
        %v1201 = vadd.f32 %v1199, %v1200
        %v1202 = vsel %vm421, %v1165, 0.0
        %v1203 = vsel %vm421, %v1166, 0.0
        %v1204 = vadd.f32 %v1202, %v1203
        %v1205 = vrot.slane %v1204, 4
        %v1206 = vadd.f32 %v1204, %v1205
        %v1207 = vrot.slane %v1206, 2
        %v1208 = vadd.f32 %v1206, %v1207
        %v1209 = vrot.slane %v1208, 1
        %v1210 = vadd.f32 %v1208, %v1209
        %v1211 = vsel %vm421, %v1167, 0.0
        %v1212 = vsel %vm421, %v1168, 0.0
        %v1213 = vadd.f32 %v1211, %v1212
        %v1214 = vrot.slane %v1213, 4
        %v1215 = vadd.f32 %v1213, %v1214
        %v1216 = vrot.slane %v1215, 2
        %v1217 = vadd.f32 %v1215, %v1216
        %v1218 = vrot.slane %v1217, 1
        %v1219 = vadd.f32 %v1217, %v1218
        %v1220 = vsel %vm421, %v1169, 0.0
        %v1221 = vsel %vm421, %v1170, 0.0
        %v1222 = vadd.f32 %v1220, %v1221
        %v1223 = vrot.slane %v1222, 4
        %v1224 = vadd.f32 %v1222, %v1223
        %v1225 = vrot.slane %v1224, 2
        %v1226 = vadd.f32 %v1224, %v1225
        %v1227 = vrot.slane %v1226, 1
        %v1228 = vadd.f32 %v1226, %v1227
        %v1229 = vsel %vm421, %v1171, 0.0
        %v1230 = vsel %vm421, %v1172, 0.0
        %v1231 = vadd.f32 %v1229, %v1230
        %v1232 = vrot.slane %v1231, 4
        %v1233 = vadd.f32 %v1231, %v1232
        %v1234 = vrot.slane %v1233, 2
        %v1235 = vadd.f32 %v1233, %v1234
        %v1236 = vrot.slane %v1235, 1
        %v1237 = vadd.f32 %v1235, %v1236
        %v1238 = vsel %vm421, %v1173, 0.0
        %v1239 = vsel %vm421, %v1174, 0.0
        %v1240 = vadd.f32 %v1238, %v1239
        %v1241 = vrot.slane %v1240, 4
        %v1242 = vadd.f32 %v1240, %v1241
        %v1243 = vrot.slane %v1242, 2
        %v1244 = vadd.f32 %v1242, %v1243
        %v1245 = vrot.slane %v1244, 1
        %v1246 = vadd.f32 %v1244, %v1245
        %v1247 = vmul.f32 %v1183, %v1134
        %v1248 = vmul.f32 %v1192, %v1134
        %v1249 = vmul.f32 %v1201, %v1134
        %v1250 = vmul.f32 %v1210, %v1134
        %v1251 = vmul.f32 %v1219, %v1134
        %v1252 = vmul.f32 %v1228, %v1134
        %v1253 = vmul.f32 %v1237, %v1134
        %v1254 = vmul.f32 %v1246, %v1134
        %v1255 = vrsqrt.pop %v1247
        %v1256 = vmul.f32 %v1247, %v1255
        %vm1257 = vcmp.eq.f32.partialorder %v1247, inf
        %v1258 = vsel %vm1257, %v1247, %v1256
        %vm1259 = vcmp.eq.f32.partialorder %v1247, 0.0
        %v1260 = vand.u32 %v1247, 2147483648
        %v1261 = vsel %vm1259, %v1260, %v1258
        %v1262 = vrsqrt.pop %v1248
        %v1263 = vmul.f32 %v1248, %v1262
        %vm1264 = vcmp.eq.f32.partialorder %v1248, inf
        %v1265 = vsel %vm1264, %v1248, %v1263
        %vm1266 = vcmp.eq.f32.partialorder %v1248, 0.0
        %v1267 = vand.u32 %v1248, 2147483648
        %v1268 = vsel %vm1266, %v1267, %v1265
        %v1269 = vrsqrt.pop %v1249
        %v1270 = vmul.f32 %v1249, %v1269
        %vm1271 = vcmp.eq.f32.partialorder %v1249, inf
        %v1272 = vsel %vm1271, %v1249, %v1270
        %vm1273 = vcmp.eq.f32.partialorder %v1249, 0.0
        %v1274 = vand.u32 %v1249, 2147483648
        %v1275 = vsel %vm1273, %v1274, %v1272
        %v1276 = vrsqrt.pop %v1250
        %v1277 = vmul.f32 %v1250, %v1276
        %vm1278 = vcmp.eq.f32.partialorder %v1250, inf
        %v1279 = vsel %vm1278, %v1250, %v1277
        %vm1280 = vcmp.eq.f32.partialorder %v1250, 0.0
        %v1281 = vand.u32 %v1250, 2147483648
        %v1282 = vsel %vm1280, %v1281, %v1279
        %v1283 = vrsqrt.pop %v1251
        %v1284 = vmul.f32 %v1251, %v1283
        %vm1285 = vcmp.eq.f32.partialorder %v1251, inf
        %v1286 = vsel %vm1285, %v1251, %v1284
        %vm1287 = vcmp.eq.f32.partialorder %v1251, 0.0
        %v1288 = vand.u32 %v1251, 2147483648
        %v1289 = vsel %vm1287, %v1288, %v1286
        %v1290 = vrsqrt.pop %v1252
        %v1291 = vmul.f32 %v1252, %v1290
        %vm1292 = vcmp.eq.f32.partialorder %v1252, inf
        %v1293 = vsel %vm1292, %v1252, %v1291
        %vm1294 = vcmp.eq.f32.partialorder %v1252, 0.0
        %v1295 = vand.u32 %v1252, 2147483648
        %v1296 = vsel %vm1294, %v1295, %v1293
        %v1297 = vrsqrt.pop %v1253
        %v1298 = vmul.f32 %v1253, %v1297
        %vm1299 = vcmp.eq.f32.partialorder %v1253, inf
        %v1300 = vsel %vm1299, %v1253, %v1298
        %vm1301 = vcmp.eq.f32.partialorder %v1253, 0.0
        %v1302 = vand.u32 %v1253, 2147483648
        %v1303 = vsel %vm1301, %v1302, %v1300
        %v1304 = vrsqrt.pop %v1254
        %v1305 = vmul.f32 %v1254, %v1304
        %vm1306 = vcmp.eq.f32.partialorder %v1254, inf
        %v1307 = vsel %vm1306, %v1254, %v1305
        %vm1308 = vcmp.eq.f32.partialorder %v1254, 0.0
        %v1309 = vand.u32 %v1254, 2147483648
        %v1310 = vsel %vm1308, %v1309, %v1307
        %v1311 = vadd.f32 %v1261, 1e-05
        %v1312 = vadd.f32 %v1268, 1e-05
        %v1313 = vadd.f32 %v1275, 1e-05
        %v1314 = vadd.f32 %v1282, 1e-05
        %v1315 = vadd.f32 %v1289, 1e-05
        %v1316 = vadd.f32 %v1296, 1e-05
        %v1317 = vadd.f32 %v1303, 1e-05
        %v1318 = vadd.f32 %v1310, 1e-05
        %v1319 = vrcp.pop %v1311
        %v1320 = vmul.f32 1.0, %v1319
        %v1321 = vrcp.pop %v1312
        %v1322 = vmul.f32 1.0, %v1321
        %v1323 = vrcp.pop %v1313
        %v1324 = vmul.f32 1.0, %v1323
        %v1325 = vrcp.pop %v1314
        %v1326 = vmul.f32 1.0, %v1325
        %v1327 = vrcp.pop %v1315
        %v1328 = vmul.f32 1.0, %v1327
        %v1329 = vrcp.pop %v1316
        %v1330 = vmul.f32 1.0, %v1329
        %v1331 = vrcp.pop %v1317
        %v1332 = vmul.f32 1.0, %v1331
        %v1333 = vrcp.pop %v1318
        %v1334 = vmul.f32 1.0, %v1333
        %v1335 = vld [vmem:[%s1] sm:$0xff]
        %v1336 = vld [vmem:[%s1 + $0x8] sm:$0xff]
        %v1338 = vsel %vm421, %v1335, 0
        %v1341 = vsel %vm421, %v1336, 0
        %1343 = vmatprep.subr.mxu0 0.0
        %1344 = vmatpush1.msra.mxu0 %v391
        %1345 = vmatprep.subr.mxu0 0.0
        %1346 = vmatpush1.msra.mxu0 0.0
        %1347 = vmatprep.subr.mxu0 0.0
        %1348 = vmatpush1.msra.mxu0 0.0
        %1349 = vmatprep.subr.mxu0 0.0
        %1350 = vmatpush1.msra.mxu0 0.0
        %1351 = vmatprep.subr.mxu0 0.0
        %1352 = vmatpush1.msra.mxu0 0.0
        %1353 = vmatprep.subr.mxu0 0.0
        %1354 = vmatpush1.msra.mxu0 0.0
        %1355 = vmatprep.subr.mxu0 0.0
        %1356 = vmatpush1.msra.mxu0 0.0
        %1357 = vmatprep.subr.mxu0 0.0
        %1358 = vmatpush1.msra.mxu0 0.0
        %1359 = vmatprep.subr.mxu0 0.0
        %1360 = vmatpush1.msra.mxu0 0.0
        %1361 = vmatprep.subr.mxu0 0.0
        %1362 = vmatpush1.msra.mxu0 0.0
        %1363 = vmatprep.subr.mxu0 0.0
        %1364 = vmatpush1.msra.mxu0 0.0
        %1365 = vmatprep.subr.mxu0 0.0
        %1366 = vmatpush1.msra.mxu0 0.0
        %1367 = vmatprep.subr.mxu0 0.0
        %1368 = vmatpush1.msra.mxu0 0.0
        %1369 = vmatprep.subr.mxu0 0.0
        %1370 = vmatpush1.msra.mxu0 0.0
        %1371 = vmatprep.subr.mxu0 0.0
        %1372 = vmatpush1.msra.mxu0 0.0
        %1373 = vmatprep.subr.mxu0 0.0
        %1374 = vmatpush1.msra.mxu0 0.0
        %1375 = vmatprep.subr.mxu0 0.0
        %1376 = vmatpush1.msra.mxu0 0.0
        %1377 = vmatprep.subr.mxu0 0.0
        %1378 = vmatpush1.msra.mxu0 0.0
        %1379 = vmatprep.subr.mxu0 0.0
        %1380 = vmatpush1.msra.mxu0 0.0
        %1381 = vmatprep.subr.mxu0 0.0
        %1382 = vmatpush1.msra.mxu0 0.0
        %1383 = vmatprep.subr.mxu0 0.0
        %1384 = vmatpush1.msra.mxu0 0.0
        %1385 = vmatprep.subr.mxu0 0.0
        %1386 = vmatpush1.msra.mxu0 0.0
        %1387 = vmatprep.subr.mxu0 0.0
        %1388 = vmatpush1.msra.mxu0 0.0
        %1389 = vmatprep.subr.mxu0 0.0
        %1390 = vmatpush1.msra.mxu0 0.0
        %1391 = vmatprep.subr.mxu0 0.0
        %1392 = vmatpush1.msra.mxu0 0.0
        %1393 = vmatprep.subr.mxu0 0.0
        %1394 = vmatpush1.msra.mxu0 0.0
        %1395 = vmatprep.subr.mxu0 0.0
        %1396 = vmatpush1.msra.mxu0 0.0
        %1397 = vmatprep.subr.mxu0 0.0
        %1398 = vmatpush1.msra.mxu0 0.0
        %1399 = vmatprep.subr.mxu0 0.0
        %1400 = vmatpush1.msra.mxu0 0.0
        %1401 = vmatprep.subr.mxu0 0.0
        %1402 = vmatpush1.msra.mxu0 0.0
        %1403 = vmatprep.subr.mxu0 0.0
        %1404 = vmatpush1.msra.mxu0 0.0
        %1405 = vmatprep.subr.mxu0 0.0
        %1406 = vmatpush1.msra.mxu0 0.0
        %1407 = vmatprep.mubr.f32.mxu0 0.0
        %1408 = vmatmul.mubr.f32.gmra.mrb[0].mxu0 %v1338
        %v1409 = vpop.f32.mrb[0].mxu0
        %v1410 = vadd.f32 %v419, %v1409
        %v1411 = vpop.f32.mrb[0].mxu0
        %1412 = vmatprep.mubr.f32.mxu0 0.0
        %1413 = vmatmul.mubr.f32.gmra.mrb[0].mxu0 %v1341
        %v1414 = vpop.f32.mrb[0].mxu0
        %v1415 = vadd.f32 %v419, %v1414
        %v1416 = vpop.f32.mrb[0].mxu0
        %1417 = vdwg.mxu0
        %v1418 = vtanh.pop %v1410
        %v1419 = vtanh.pop %v1415
        %v1421 = vsel %vm637, %v1418, 0
        %v1424 = vsel %vm637, %v1419, 0
        %1426 = vmatprep.subr.mxu0 0.0
        %1427 = vmatpush1.msra.mxu0 %v393
        %1428 = vmatprep.subr.mxu0 0.0
        %1429 = vmatpush1.msra.mxu0 %v394
        %1430 = vmatprep.subr.mxu0 0.0
        %1431 = vmatpush1.msra.mxu0 0.0
        %1432 = vmatprep.subr.mxu0 0.0
        %1433 = vmatpush1.msra.mxu0 0.0
        %1434 = vmatprep.subr.mxu0 0.0
        %1435 = vmatpush1.msra.mxu0 0.0
        %1436 = vmatprep.subr.mxu0 0.0
        %1437 = vmatpush1.msra.mxu0 0.0
        %1438 = vmatprep.subr.mxu0 0.0
        %1439 = vmatpush1.msra.mxu0 0.0
        %1440 = vmatprep.subr.mxu0 0.0
        %1441 = vmatpush1.msra.mxu0 0.0
        %1442 = vmatprep.subr.mxu0 0.0
        %1443 = vmatpush1.msra.mxu0 0.0
        %1444 = vmatprep.subr.mxu0 0.0
        %1445 = vmatpush1.msra.mxu0 0.0
        %1446 = vmatprep.subr.mxu0 0.0
        %1447 = vmatpush1.msra.mxu0 0.0
        %1448 = vmatprep.subr.mxu0 0.0
        %1449 = vmatpush1.msra.mxu0 0.0
        %1450 = vmatprep.subr.mxu0 0.0
        %1451 = vmatpush1.msra.mxu0 0.0
        %1452 = vmatprep.subr.mxu0 0.0
        %1453 = vmatpush1.msra.mxu0 0.0
        %1454 = vmatprep.subr.mxu0 0.0
        %1455 = vmatpush1.msra.mxu0 0.0
        %1456 = vmatprep.subr.mxu0 0.0
        %1457 = vmatpush1.msra.mxu0 0.0
        %1458 = vmatprep.subr.mxu0 0.0
        %1459 = vmatpush1.msra.mxu0 0.0
        %1460 = vmatprep.subr.mxu0 0.0
        %1461 = vmatpush1.msra.mxu0 0.0
        %1462 = vmatprep.subr.mxu0 0.0
        %1463 = vmatpush1.msra.mxu0 0.0
        %1464 = vmatprep.subr.mxu0 0.0
        %1465 = vmatpush1.msra.mxu0 0.0
        %1466 = vmatprep.subr.mxu0 0.0
        %1467 = vmatpush1.msra.mxu0 0.0
        %1468 = vmatprep.subr.mxu0 0.0
        %1469 = vmatpush1.msra.mxu0 0.0
        %1470 = vmatprep.subr.mxu0 0.0
        %1471 = vmatpush1.msra.mxu0 0.0
        %1472 = vmatprep.subr.mxu0 0.0
        %1473 = vmatpush1.msra.mxu0 0.0
        %1474 = vmatprep.subr.mxu0 0.0
        %1475 = vmatpush1.msra.mxu0 0.0
        %1476 = vmatprep.subr.mxu0 0.0
        %1477 = vmatpush1.msra.mxu0 0.0
        %1478 = vmatprep.subr.mxu0 0.0
        %1479 = vmatpush1.msra.mxu0 0.0
        %1480 = vmatprep.subr.mxu0 0.0
        %1481 = vmatpush1.msra.mxu0 0.0
        %1482 = vmatprep.subr.mxu0 0.0
        %1483 = vmatpush1.msra.mxu0 0.0
        %1484 = vmatprep.subr.mxu0 0.0
        %1485 = vmatpush1.msra.mxu0 0.0
        %1486 = vmatprep.subr.mxu0 0.0
        %1487 = vmatpush1.msra.mxu0 0.0
        %1488 = vmatprep.subr.mxu0 0.0
        %1489 = vmatpush1.msra.mxu0 0.0
        %1490 = vmatprep.mubr.f32.mxu0 0.0
        %1491 = vmatmul.mubr.f32.gmra.mrb[0].mxu0 %v1421
        %v1492 = vpop.f32.mrb[0].mxu0
        %v1493 = vadd.f32 %v635, %v1492
        %v1494 = vpop.f32.mrb[0].mxu0
        %1495 = vmatprep.mubr.f32.mxu0 0.0
        %1496 = vmatmul.mubr.f32.gmra.mrb[0].mxu0 %v1424
        %v1497 = vpop.f32.mrb[0].mxu0
        %v1498 = vadd.f32 %v635, %v1497
        %v1499 = vpop.f32.mrb[0].mxu0
        %1500 = vdwg.mxu0
        %v1501 = vtanh.pop %v1493
        %v1502 = vtanh.pop %v1498
        %v1504 = vsel %vm637, %v1501, 0
        %v1507 = vsel %vm637, %v1502, 0
        %1509 = vmatprep.subr.mxu0 0.0
        %1510 = vmatpush1.msra.mxu0 %v396
        %1511 = vmatprep.subr.mxu0 0.0
        %1512 = vmatpush1.msra.mxu0 %v397
        %1513 = vmatprep.subr.mxu0 0.0
        %1514 = vmatpush1.msra.mxu0 0.0
        %1515 = vmatprep.subr.mxu0 0.0
        %1516 = vmatpush1.msra.mxu0 0.0
        %1517 = vmatprep.subr.mxu0 0.0
        %1518 = vmatpush1.msra.mxu0 0.0
        %1519 = vmatprep.subr.mxu0 0.0
        %1520 = vmatpush1.msra.mxu0 0.0
        %1521 = vmatprep.subr.mxu0 0.0
        %1522 = vmatpush1.msra.mxu0 0.0
        %1523 = vmatprep.subr.mxu0 0.0
        %1524 = vmatpush1.msra.mxu0 0.0
        %1525 = vmatprep.subr.mxu0 0.0
        %1526 = vmatpush1.msra.mxu0 0.0
        %1527 = vmatprep.subr.mxu0 0.0
        %1528 = vmatpush1.msra.mxu0 0.0
        %1529 = vmatprep.subr.mxu0 0.0
        %1530 = vmatpush1.msra.mxu0 0.0
        %1531 = vmatprep.subr.mxu0 0.0
        %1532 = vmatpush1.msra.mxu0 0.0
        %1533 = vmatprep.subr.mxu0 0.0
        %1534 = vmatpush1.msra.mxu0 0.0
        %1535 = vmatprep.subr.mxu0 0.0
        %1536 = vmatpush1.msra.mxu0 0.0
        %1537 = vmatprep.subr.mxu0 0.0
        %1538 = vmatpush1.msra.mxu0 0.0
        %1539 = vmatprep.subr.mxu0 0.0
        %1540 = vmatpush1.msra.mxu0 0.0
        %1541 = vmatprep.subr.mxu0 0.0
        %1542 = vmatpush1.msra.mxu0 0.0
        %1543 = vmatprep.subr.mxu0 0.0
        %1544 = vmatpush1.msra.mxu0 0.0
        %1545 = vmatprep.subr.mxu0 0.0
        %1546 = vmatpush1.msra.mxu0 0.0
        %1547 = vmatprep.subr.mxu0 0.0
        %1548 = vmatpush1.msra.mxu0 0.0
        %1549 = vmatprep.subr.mxu0 0.0
        %1550 = vmatpush1.msra.mxu0 0.0
        %1551 = vmatprep.subr.mxu0 0.0
        %1552 = vmatpush1.msra.mxu0 0.0
        %1553 = vmatprep.subr.mxu0 0.0
        %1554 = vmatpush1.msra.mxu0 0.0
        %1555 = vmatprep.subr.mxu0 0.0
        %1556 = vmatpush1.msra.mxu0 0.0
        %1557 = vmatprep.subr.mxu0 0.0
        %1558 = vmatpush1.msra.mxu0 0.0
        %1559 = vmatprep.subr.mxu0 0.0
        %1560 = vmatpush1.msra.mxu0 0.0
        %1561 = vmatprep.subr.mxu0 0.0
        %1562 = vmatpush1.msra.mxu0 0.0
        %1563 = vmatprep.subr.mxu0 0.0
        %1564 = vmatpush1.msra.mxu0 0.0
        %1565 = vmatprep.subr.mxu0 0.0
        %1566 = vmatpush1.msra.mxu0 0.0
        %1567 = vmatprep.subr.mxu0 0.0
        %1568 = vmatpush1.msra.mxu0 0.0
        %1569 = vmatprep.subr.mxu0 0.0
        %1570 = vmatpush1.msra.mxu0 0.0
        %1571 = vmatprep.subr.mxu0 0.0
        %1572 = vmatpush1.msra.mxu0 0.0
        %1573 = vmatprep.mubr.f32.mxu0 0.0
        %1574 = vmatmul.mubr.f32.gmra.mrb[0].mxu0 %v1504
        %v1575 = vpop.f32.mrb[0].mxu0
        %v1576 = vadd.f32 %v851, %v1575
        %v1577 = vpop.f32.mrb[0].mxu0
        %1578 = vmatprep.mubr.f32.mxu0 0.0
        %1579 = vmatmul.mubr.f32.gmra.mrb[0].mxu0 %v1507
        %v1580 = vpop.f32.mrb[0].mxu0
        %v1581 = vadd.f32 %v851, %v1580
        %v1582 = vpop.f32.mrb[0].mxu0
        %1583 = vdwg.mxu0
        %v1584 = vtanh.pop %v1576
        %v1585 = vtanh.pop %v1581
        %v1586 = vld [vmem:[%s386] sm:$0xff]
        %v1588 = vsel %vm637, %v1586, 0
        %1590 = vmatprep.subr.mxu0 0.0
        %1591 = vmatpush1.msra.mxu0 %v1584
        %1592 = vmatprep.subr.mxu0 0.0
        %1593 = vmatpush1.msra.mxu0 %v1585
        %1594 = vmatprep.subr.mxu0 0.0
        %1595 = vmatpush1.msra.mxu0 0.0
        %1596 = vmatprep.subr.mxu0 0.0
        %1597 = vmatpush1.msra.mxu0 0.0
        %1598 = vmatprep.subr.mxu0 0.0
        %1599 = vmatpush1.msra.mxu0 0.0
        %1600 = vmatprep.subr.mxu0 0.0
        %1601 = vmatpush1.msra.mxu0 0.0
        %1602 = vmatprep.subr.mxu0 0.0
        %1603 = vmatpush1.msra.mxu0 0.0
        %1604 = vmatprep.subr.mxu0 0.0
        %1605 = vmatpush1.msra.mxu0 0.0
        %1606 = vmatprep.subr.mxu0 0.0
        %1607 = vmatpush1.msra.mxu0 0.0
        %1608 = vmatprep.subr.mxu0 0.0
        %1609 = vmatpush1.msra.mxu0 0.0
        %1610 = vmatprep.subr.mxu0 0.0
        %1611 = vmatpush1.msra.mxu0 0.0
        %1612 = vmatprep.subr.mxu0 0.0
        %1613 = vmatpush1.msra.mxu0 0.0
        %1614 = vmatprep.subr.mxu0 0.0
        %1615 = vmatpush1.msra.mxu0 0.0
        %1616 = vmatprep.subr.mxu0 0.0
        %1617 = vmatpush1.msra.mxu0 0.0
        %1618 = vmatprep.subr.mxu0 0.0
        %1619 = vmatpush1.msra.mxu0 0.0
        %1620 = vmatprep.subr.mxu0 0.0
        %1621 = vmatpush1.msra.mxu0 0.0
        %1622 = vmatprep.subr.mxu0 0.0
        %1623 = vmatpush1.msra.mxu0 0.0
        %1624 = vmatprep.subr.mxu0 0.0
        %1625 = vmatpush1.msra.mxu0 0.0
        %1626 = vmatprep.subr.mxu0 0.0
        %1627 = vmatpush1.msra.mxu0 0.0
        %1628 = vmatprep.subr.mxu0 0.0
        %1629 = vmatpush1.msra.mxu0 0.0
        %1630 = vmatprep.subr.mxu0 0.0
        %1631 = vmatpush1.msra.mxu0 0.0
        %1632 = vmatprep.subr.mxu0 0.0
        %1633 = vmatpush1.msra.mxu0 0.0
        %1634 = vmatprep.subr.mxu0 0.0
        %1635 = vmatpush1.msra.mxu0 0.0
        %1636 = vmatprep.subr.mxu0 0.0
        %1637 = vmatpush1.msra.mxu0 0.0
        %1638 = vmatprep.subr.mxu0 0.0
        %1639 = vmatpush1.msra.mxu0 0.0
        %1640 = vmatprep.subr.mxu0 0.0
        %1641 = vmatpush1.msra.mxu0 0.0
        %1642 = vmatprep.subr.mxu0 0.0
        %1643 = vmatpush1.msra.mxu0 0.0
        %1644 = vmatprep.subr.mxu0 0.0
        %1645 = vmatpush1.msra.mxu0 0.0
        %1646 = vmatprep.subr.mxu0 0.0
        %1647 = vmatpush1.msra.mxu0 0.0
        %1648 = vmatprep.subr.mxu0 0.0
        %1649 = vmatpush1.msra.mxu0 0.0
        %1650 = vmatprep.subr.mxu0 0.0
        %1651 = vmatpush1.msra.mxu0 0.0
        %1652 = vmatprep.subr.mxu0 0.0
        %1653 = vmatpush1.msra.mxu0 0.0
        %1654 = vmatprep.mubr.f32.mxu0 0.0
        %1655 = vmatmul.mubr.f32.gmra.mrb[0].mxu0 %v1588
        %v1656 = vpop.f32.mrb[0].mxu0
        %v1657 = vadd.f32 0.0, %v1656
        %v1658 = vpop.f32.mrb[0].mxu0
        %1659 = vdwg.mxu0
        %v1660 = vsel %vm637, %v1586, 0.0
        %1661 = vadd.xlane.f32.xlu0 %v1660
        %v1662 = vpop.xlane.xlu0 %1661
        %v1664 = vrot.slane %v1662, 1
        %v1665 = vrot.slane %v1662, 2
        %v1666 = vrot.slane %v1662, 3
        %v1667 = vrot.slane %v1662, 4
        %v1668 = vrot.slane %v1662, 5
        %v1669 = vrot.slane %v1662, 6
        %v1670 = vrot.slane %v1662, 7
        %v1679 = vmul.f32 %v1135, %v1662
        %v1680 = vmul.f32 %v1136, %v1664
        %v1681 = vmul.f32 %v1137, %v1665
        %v1682 = vmul.f32 %v1138, %v1666
        %v1683 = vmul.f32 %v1139, %v1667
        %v1684 = vmul.f32 %v1140, %v1668
        %v1685 = vmul.f32 %v1141, %v1669
        %v1686 = vmul.f32 %v1142, %v1670
        %v1695 = vrot.slane %v1680, 7
        %vm1696 = vcmask 1041409
        %v1697 = vsel %vm1696, %v1695, %v1679
        %v1698 = vrot.slane %v1681, 6
        %vm1699 = vcmask 1042434
        %v1700 = vsel %vm1699, %v1698, %v1697
        %v1701 = vrot.slane %v1682, 5
        %vm1702 = vcmask 1043459
        %v1703 = vsel %vm1702, %v1701, %v1700
        %v1704 = vrot.slane %v1683, 4
        %vm1705 = vcmask 1044484
        %v1706 = vsel %vm1705, %v1704, %v1703
        %v1707 = vrot.slane %v1684, 3
        %vm1708 = vcmask 1045509
        %v1709 = vsel %vm1708, %v1707, %v1706
        %v1710 = vrot.slane %v1685, 2
        %vm1711 = vcmask 1046534
        %v1712 = vsel %vm1711, %v1710, %v1709
        %v1713 = vrot.slane %v1686, 1
        %vm1714 = vcmask 1047559
        %v1715 = vsel %vm1714, %v1713, %v1712
        %v1717 = vsub.f32 %v1657, %v1715
        %v1726 = vsel %vm1696, %v1322, %v1320
        %v1727 = vsel %vm1699, %v1324, %v1726
        %v1728 = vsel %vm1702, %v1326, %v1727
        %v1729 = vsel %vm1705, %v1328, %v1728
        %v1730 = vsel %vm1708, %v1330, %v1729
        %v1731 = vsel %vm1711, %v1332, %v1730
        %v1732 = vsel %vm1714, %v1334, %v1731
        %v1734 = vmul.f32 %v1717, %v1732
        %1735 = vst.msk [vmem:[%s390] sm:$0xff] %vm421, %v1734
        %v1736 = vsub.f32 %v1584, %v1135
        %v1737 = vsub.f32 %v1585, %v1135
        %v1738 = vsub.f32 %v1584, %v1136
        %v1739 = vsub.f32 %v1585, %v1136
        %v1740 = vsub.f32 %v1584, %v1137
        %v1741 = vsub.f32 %v1585, %v1137
        %v1742 = vsub.f32 %v1584, %v1138
        %v1743 = vsub.f32 %v1585, %v1138
        %v1744 = vsub.f32 %v1584, %v1139
        %v1745 = vsub.f32 %v1585, %v1139
        %v1746 = vsub.f32 %v1584, %v1140
        %v1747 = vsub.f32 %v1585, %v1140
        %v1748 = vsub.f32 %v1584, %v1141
        %v1749 = vsub.f32 %v1585, %v1141
        %v1750 = vsub.f32 %v1584, %v1142
        %v1751 = vsub.f32 %v1585, %v1142
        %v1752 = vmul.f32 %v1736, %v1320
        %v1753 = vmul.f32 %v1737, %v1320
        %v1754 = vmul.f32 %v1738, %v1322
        %v1755 = vmul.f32 %v1739, %v1322
        %v1756 = vmul.f32 %v1740, %v1324
        %v1757 = vmul.f32 %v1741, %v1324
        %v1758 = vmul.f32 %v1742, %v1326
        %v1759 = vmul.f32 %v1743, %v1326
        %v1760 = vmul.f32 %v1744, %v1328
        %v1761 = vmul.f32 %v1745, %v1328
        %v1762 = vmul.f32 %v1746, %v1330
        %v1763 = vmul.f32 %v1747, %v1330
        %v1764 = vmul.f32 %v1748, %v1332
        %v1765 = vmul.f32 %v1749, %v1332
        %v1766 = vmul.f32 %v1750, %v1334
        %v1767 = vmul.f32 %v1751, %v1334
        %v1768 = vcombine.low %v1752, %v1756
        %v1769 = vcombine.high %v1752, %v1756
        %v1771 = vunpack.c.l.s4 1983009808
        %v1772 = vunpack.c.0.s8 %v1771
        %v1773 = vlaneseq
        %v1774 = vshrl.u32 %v1773, 7
        %v1775 = vsub.s32 %v1772, %v1774
        %v1776 = vrot.slane %v1768, %v1775
        %v1778 = vunpack.c.l.s4 1983009808
        %v1779 = vunpack.c.0.s8 %v1778
        %v1780 = vlaneseq
        %v1781 = vshrl.u32 %v1780, 7
        %v1782 = vsub.s32 %v1779, %v1781
        %v1783 = vrot.slane %v1769, %v1782
        %v1784 = vcombine.low %v1754, %v1758
        %v1785 = vcombine.high %v1754, %v1758
        %v1787 = vunpack.c.l.s4 1983009808
        %v1788 = vunpack.c.0.s8 %v1787
        %v1789 = vlaneseq
        %v1790 = vshrl.u32 %v1789, 7
        %v1791 = vsub.s32 %v1788, %v1790
        %v1792 = vrot.slane %v1784, %v1791
        %v1794 = vunpack.c.l.s4 1983009808
        %v1795 = vunpack.c.0.s8 %v1794
        %v1796 = vlaneseq
        %v1797 = vshrl.u32 %v1796, 7
        %v1798 = vsub.s32 %v1795, %v1797
        %v1799 = vrot.slane %v1785, %v1798
        %v1800 = vcombine.low %v1760, %v1764
        %v1801 = vcombine.high %v1760, %v1764
        %v1803 = vunpack.c.l.s4 1983009808
        %v1804 = vunpack.c.0.s8 %v1803
        %v1805 = vlaneseq
        %v1806 = vshrl.u32 %v1805, 7
        %v1807 = vsub.s32 %v1804, %v1806
        %v1808 = vrot.slane %v1800, %v1807
        %v1810 = vunpack.c.l.s4 1983009808
        %v1811 = vunpack.c.0.s8 %v1810
        %v1812 = vlaneseq
        %v1813 = vshrl.u32 %v1812, 7
        %v1814 = vsub.s32 %v1811, %v1813
        %v1815 = vrot.slane %v1801, %v1814
        %v1816 = vcombine.low %v1762, %v1766
        %v1817 = vcombine.high %v1762, %v1766
        %v1819 = vunpack.c.l.s4 1983009808
        %v1820 = vunpack.c.0.s8 %v1819
        %v1821 = vlaneseq
        %v1822 = vshrl.u32 %v1821, 7
        %v1823 = vsub.s32 %v1820, %v1822
        %v1824 = vrot.slane %v1816, %v1823
        %v1826 = vunpack.c.l.s4 1983009808
        %v1827 = vunpack.c.0.s8 %v1826
        %v1828 = vlaneseq
        %v1829 = vshrl.u32 %v1828, 7
        %v1830 = vsub.s32 %v1827, %v1829
        %v1831 = vrot.slane %v1817, %v1830
        %v1832 = vcombine.low %v1776, %v1792
        %v1833 = vcombine.high %v1776, %v1792
        %v1835 = vunpack.c.l.s4 1934713408
        %v1836 = vunpack.c.0.s8 %v1835
        %v1837 = vlaneseq
        %v1838 = vshrl.u32 %v1837, 7
        %v1839 = vsub.s32 %v1836, %v1838
        %v1840 = vrot.slane %v1832, %v1839
        %v1842 = vunpack.c.l.s4 1934713408
        %v1843 = vunpack.c.0.s8 %v1842
        %v1844 = vlaneseq
        %v1845 = vshrl.u32 %v1844, 7
        %v1846 = vsub.s32 %v1843, %v1845
        %v1847 = vrot.slane %v1833, %v1846
        %v1848 = vcombine.low %v1783, %v1799
        %v1849 = vcombine.high %v1783, %v1799
        %v1851 = vunpack.c.l.s4 1934713408
        %v1852 = vunpack.c.0.s8 %v1851
        %v1853 = vlaneseq
        %v1854 = vshrl.u32 %v1853, 7
        %v1855 = vsub.s32 %v1852, %v1854
        %v1856 = vrot.slane %v1848, %v1855
        %v1858 = vunpack.c.l.s4 1934713408
        %v1859 = vunpack.c.0.s8 %v1858
        %v1860 = vlaneseq
        %v1861 = vshrl.u32 %v1860, 7
        %v1862 = vsub.s32 %v1859, %v1861
        %v1863 = vrot.slane %v1849, %v1862
        %v1864 = vcombine.low %v1808, %v1824
        %v1865 = vcombine.high %v1808, %v1824
        %v1867 = vunpack.c.l.s4 1934713408
        %v1868 = vunpack.c.0.s8 %v1867
        %v1869 = vlaneseq
        %v1870 = vshrl.u32 %v1869, 7
        %v1871 = vsub.s32 %v1868, %v1870
        %v1872 = vrot.slane %v1864, %v1871
        %v1874 = vunpack.c.l.s4 1934713408
        %v1875 = vunpack.c.0.s8 %v1874
        %v1876 = vlaneseq
        %v1877 = vshrl.u32 %v1876, 7
        %v1878 = vsub.s32 %v1875, %v1877
        %v1879 = vrot.slane %v1865, %v1878
        %v1880 = vcombine.low %v1815, %v1831
        %v1881 = vcombine.high %v1815, %v1831
        %v1883 = vunpack.c.l.s4 1934713408
        %v1884 = vunpack.c.0.s8 %v1883
        %v1885 = vlaneseq
        %v1886 = vshrl.u32 %v1885, 7
        %v1887 = vsub.s32 %v1884, %v1886
        %v1888 = vrot.slane %v1880, %v1887
        %v1890 = vunpack.c.l.s4 1934713408
        %v1891 = vunpack.c.0.s8 %v1890
        %v1892 = vlaneseq
        %v1893 = vshrl.u32 %v1892, 7
        %v1894 = vsub.s32 %v1891, %v1893
        %v1895 = vrot.slane %v1881, %v1894
        %v1896 = vcombine.low %v1840, %v1872
        %v1897 = vcombine.high %v1840, %v1872
        %v1898 = vcombine.low %v1847, %v1879
        %v1899 = vcombine.high %v1847, %v1879
        %v1900 = vcombine.low %v1856, %v1888
        %v1901 = vcombine.high %v1856, %v1888
        %v1902 = vcombine.low %v1863, %v1895
        %v1903 = vcombine.high %v1863, %v1895
        %v1904 = vcombine.low %v1753, %v1757
        %v1905 = vcombine.high %v1753, %v1757
        %v1907 = vunpack.c.l.s4 1983009808
        %v1908 = vunpack.c.0.s8 %v1907
        %v1909 = vlaneseq
        %v1910 = vshrl.u32 %v1909, 7
        %v1911 = vsub.s32 %v1908, %v1910
        %v1912 = vrot.slane %v1904, %v1911
        %v1914 = vunpack.c.l.s4 1983009808
        %v1915 = vunpack.c.0.s8 %v1914
        %v1916 = vlaneseq
        %v1917 = vshrl.u32 %v1916, 7
        %v1918 = vsub.s32 %v1915, %v1917
        %v1919 = vrot.slane %v1905, %v1918
        %v1920 = vcombine.low %v1755, %v1759
        %v1921 = vcombine.high %v1755, %v1759
        %v1923 = vunpack.c.l.s4 1983009808
        %v1924 = vunpack.c.0.s8 %v1923
        %v1925 = vlaneseq
        %v1926 = vshrl.u32 %v1925, 7
        %v1927 = vsub.s32 %v1924, %v1926
        %v1928 = vrot.slane %v1920, %v1927
        %v1930 = vunpack.c.l.s4 1983009808
        %v1931 = vunpack.c.0.s8 %v1930
        %v1932 = vlaneseq
        %v1933 = vshrl.u32 %v1932, 7
        %v1934 = vsub.s32 %v1931, %v1933
        %v1935 = vrot.slane %v1921, %v1934
        %v1936 = vcombine.low %v1761, %v1765
        %v1937 = vcombine.high %v1761, %v1765
        %v1939 = vunpack.c.l.s4 1983009808
        %v1940 = vunpack.c.0.s8 %v1939
        %v1941 = vlaneseq
        %v1942 = vshrl.u32 %v1941, 7
        %v1943 = vsub.s32 %v1940, %v1942
        %v1944 = vrot.slane %v1936, %v1943
        %v1946 = vunpack.c.l.s4 1983009808
        %v1947 = vunpack.c.0.s8 %v1946
        %v1948 = vlaneseq
        %v1949 = vshrl.u32 %v1948, 7
        %v1950 = vsub.s32 %v1947, %v1949
        %v1951 = vrot.slane %v1937, %v1950
        %v1952 = vcombine.low %v1763, %v1767
        %v1953 = vcombine.high %v1763, %v1767
        %v1955 = vunpack.c.l.s4 1983009808
        %v1956 = vunpack.c.0.s8 %v1955
        %v1957 = vlaneseq
        %v1958 = vshrl.u32 %v1957, 7
        %v1959 = vsub.s32 %v1956, %v1958
        %v1960 = vrot.slane %v1952, %v1959
        %v1962 = vunpack.c.l.s4 1983009808
        %v1963 = vunpack.c.0.s8 %v1962
        %v1964 = vlaneseq
        %v1965 = vshrl.u32 %v1964, 7
        %v1966 = vsub.s32 %v1963, %v1965
        %v1967 = vrot.slane %v1953, %v1966
        %v1968 = vcombine.low %v1912, %v1928
        %v1969 = vcombine.high %v1912, %v1928
        %v1971 = vunpack.c.l.s4 1934713408
        %v1972 = vunpack.c.0.s8 %v1971
        %v1973 = vlaneseq
        %v1974 = vshrl.u32 %v1973, 7
        %v1975 = vsub.s32 %v1972, %v1974
        %v1976 = vrot.slane %v1968, %v1975
        %v1978 = vunpack.c.l.s4 1934713408
        %v1979 = vunpack.c.0.s8 %v1978
        %v1980 = vlaneseq
        %v1981 = vshrl.u32 %v1980, 7
        %v1982 = vsub.s32 %v1979, %v1981
        %v1983 = vrot.slane %v1969, %v1982
        %v1984 = vcombine.low %v1919, %v1935
        %v1985 = vcombine.high %v1919, %v1935
        %v1987 = vunpack.c.l.s4 1934713408
        %v1988 = vunpack.c.0.s8 %v1987
        %v1989 = vlaneseq
        %v1990 = vshrl.u32 %v1989, 7
        %v1991 = vsub.s32 %v1988, %v1990
        %v1992 = vrot.slane %v1984, %v1991
        %v1994 = vunpack.c.l.s4 1934713408
        %v1995 = vunpack.c.0.s8 %v1994
        %v1996 = vlaneseq
        %v1997 = vshrl.u32 %v1996, 7
        %v1998 = vsub.s32 %v1995, %v1997
        %v1999 = vrot.slane %v1985, %v1998
        %v2000 = vcombine.low %v1944, %v1960
        %v2001 = vcombine.high %v1944, %v1960
        %v2003 = vunpack.c.l.s4 1934713408
        %v2004 = vunpack.c.0.s8 %v2003
        %v2005 = vlaneseq
        %v2006 = vshrl.u32 %v2005, 7
        %v2007 = vsub.s32 %v2004, %v2006
        %v2008 = vrot.slane %v2000, %v2007
        %v2010 = vunpack.c.l.s4 1934713408
        %v2011 = vunpack.c.0.s8 %v2010
        %v2012 = vlaneseq
        %v2013 = vshrl.u32 %v2012, 7
        %v2014 = vsub.s32 %v2011, %v2013
        %v2015 = vrot.slane %v2001, %v2014
        %v2016 = vcombine.low %v1951, %v1967
        %v2017 = vcombine.high %v1951, %v1967
        %v2019 = vunpack.c.l.s4 1934713408
        %v2020 = vunpack.c.0.s8 %v2019
        %v2021 = vlaneseq
        %v2022 = vshrl.u32 %v2021, 7
        %v2023 = vsub.s32 %v2020, %v2022
        %v2024 = vrot.slane %v2016, %v2023
        %v2026 = vunpack.c.l.s4 1934713408
        %v2027 = vunpack.c.0.s8 %v2026
        %v2028 = vlaneseq
        %v2029 = vshrl.u32 %v2028, 7
        %v2030 = vsub.s32 %v2027, %v2029
        %v2031 = vrot.slane %v2017, %v2030
        %v2032 = vcombine.low %v1976, %v2008
        %v2033 = vcombine.high %v1976, %v2008
        %v2034 = vcombine.low %v1983, %v2015
        %v2035 = vcombine.high %v1983, %v2015
        %v2036 = vcombine.low %v1992, %v2024
        %v2037 = vcombine.high %v1992, %v2024
        %v2038 = vcombine.low %v1999, %v2031
        %v2039 = vcombine.high %v1999, %v2031
        %2041 = vrot.lane.b32.xlu0 %v1897, 8
        %v2042 = vpop.permute.xlu0 %2041
        %2045 = vrot.lane.b32.xlu0 %v1898, 16
        %v2046 = vpop.permute.xlu0 %2045
        %2049 = vrot.lane.b32.xlu0 %v1899, 24
        %v2050 = vpop.permute.xlu0 %2049
        %2053 = vrot.lane.b32.xlu0 %v1900, 32
        %v2054 = vpop.permute.xlu0 %2053
        %2057 = vrot.lane.b32.xlu0 %v1901, 40
        %v2058 = vpop.permute.xlu0 %2057
        %2061 = vrot.lane.b32.xlu0 %v1902, 48
        %v2062 = vpop.permute.xlu0 %2061
        %2065 = vrot.lane.b32.xlu0 %v1903, 56
        %v2066 = vpop.permute.xlu0 %2065
        %2069 = vrot.lane.b32.xlu0 %v2032, 64
        %v2070 = vpop.permute.xlu0 %2069
        %2073 = vrot.lane.b32.xlu0 %v2033, 72
        %v2074 = vpop.permute.xlu0 %2073
        %2077 = vrot.lane.b32.xlu0 %v2034, 80
        %v2078 = vpop.permute.xlu0 %2077
        %2081 = vrot.lane.b32.xlu0 %v2035, 88
        %v2082 = vpop.permute.xlu0 %2081
        %2085 = vrot.lane.b32.xlu0 %v2036, 96
        %v2086 = vpop.permute.xlu0 %2085
        %2089 = vrot.lane.b32.xlu0 %v2037, 104
        %v2090 = vpop.permute.xlu0 %2089
        %2093 = vrot.lane.b32.xlu0 %v2038, 112
        %v2094 = vpop.permute.xlu0 %2093
        %2097 = vrot.lane.b32.xlu0 %v2039, 120
        %v2098 = vpop.permute.xlu0 %2097
        %v2100 = vsel %vm421, %v1896, %v2042
        %v2101 = vsel %vm637, %v2100, %v2046
        %vm2102 = vcmask 195584
        %v2103 = vsel %vm2102, %v2101, %v2050
        %vm2104 = vcmask 261120
        %v2105 = vsel %vm2104, %v2103, %v2054
        %vm2106 = vcmask 326656
        %v2107 = vsel %vm2106, %v2105, %v2058
        %vm2108 = vcmask 392192
        %v2109 = vsel %vm2108, %v2107, %v2062
        %vm2110 = vcmask 457728
        %v2111 = vsel %vm2110, %v2109, %v2066
        %vm2112 = vcmask 523264
        %v2113 = vsel %vm2112, %v2111, %v2070
        %vm2114 = vcmask 588800
        %v2115 = vsel %vm2114, %v2113, %v2074
        %vm2116 = vcmask 654336
        %v2117 = vsel %vm2116, %v2115, %v2078
        %vm2118 = vcmask 719872
        %v2119 = vsel %vm2118, %v2117, %v2082
        %vm2120 = vcmask 785408
        %v2121 = vsel %vm2120, %v2119, %v2086
        %vm2122 = vcmask 850944
        %v2123 = vsel %vm2122, %v2121, %v2090
        %vm2124 = vcmask 916480
        %v2125 = vsel %vm2124, %v2123, %v2094
        %vm2126 = vcmask 982016
        %v2127 = vsel %vm2126, %v2125, %v2098
        %2128 = vst [vmem:[%s375] sm:$0xff] %v2127
        %p2129 = scmp.lt.s32.totalorder %s25, 1
        %s2130 = scalar_select %p2129, %s25, 1
        %s2131 = smul.addr %s2130, 8
        %s2132 = scalar_lea.vmem %s9, %s2131
        %s2133 = sand.u32 %s258, 1
        %s2134 = scalar_lea.sflag [#allocation3], %s2133
        %s2135 = sand.u32 %s258, 1
        %s2136 = smul.addr %s2135, 8
        %s2137 = scalar_lea.vmem [#allocation2], %s2136
        // Predicated region
        $region57: #{tpu_custom_call.1} parent=55 // pred_check
          %p2138 = pneg %p242
        $region58: #{tpu_custom_call.1} parent=55 // pred_check_branch
          %2140 = sbr.rel (%p2138) target = $region60
        $region59: #{tpu_custom_call.1} parent=55 // pred_region
          _
        $region60: #{tpu_custom_call.1} parent=55 // pred_fallthru
          _
        // Predicated region
        $region61: #{tpu_custom_call.1} parent=55 // pred_check
          %p2141 = pneg %p268
        $region62: #{tpu_custom_call.1} parent=55 // pred_check_branch
          %2143 = sbr.rel (%p2141) target = $region64
        $region63: #{tpu_custom_call.1} parent=55 // pred_region
          %s2145 = ssub.s32 128, 128
          %2146 = vsyncadd %s2134, %s2145
          %s2147 = smul.addr %s25, 128
          %s2148 = scalar_lea.hbm %s10, %s2147
          %s2150 = sshll.u32 %s2137, 4
          %s2151 = int_to_ptr.vmem [resolvable:$true] %s2150
          %2153 = dma.vmem_to_hbm [thread:$0]  %s2151, 128, %s2148, %s2134
        $region64: #{tpu_custom_call.1} parent=55 // pred_fallthru
          _
      $region56: #{tpu_custom_call.1} parent=5 // pred_fallthru
        _
      %p2154 = scmp.le.s32.totalorder 2, %s20
      // Predicated region
      $region65: #{tpu_custom_call.1} parent=5 // pred_check
        %p2155 = pneg %p2154
      $region66: #{tpu_custom_call.1} parent=5 // pred_check_branch
        %2157 = sbr.rel (%p2155) target = $region68
      $region67: #{tpu_custom_call.1} parent=5 // pred_region
        %s2158 = ssub.s32 %s20, 2
        // Predicated region
        $region69: #{tpu_custom_call.1} parent=67 // pred_check
          %p2159 = pneg %p248
        $region70: #{tpu_custom_call.1} parent=67 // pred_check_branch
          %2161 = sbr.rel (%p2159) target = $region72
        $region71: #{tpu_custom_call.1} parent=67 // pred_region
          %p2162 = scmp.lt.s32.totalorder %s26, 1
          %s2163 = scalar_select %p2162, %s26, 1
          %s2164 = smul.addr %s2163, 8
          %s2165 = scalar_lea.vmem %s9, %s2164
        $region72: #{tpu_custom_call.1} parent=67 // pred_fallthru
          _
        // Predicated region
        $region73: #{tpu_custom_call.1} parent=67 // pred_check
          %p2166 = pneg %p274
        $region74: #{tpu_custom_call.1} parent=67 // pred_check_branch
          %2168 = sbr.rel (%p2166) target = $region76
        $region75: #{tpu_custom_call.1} parent=67 // pred_region
          %s2169 = sand.u32 %s259, 1
          %s2170 = scalar_lea.sflag [#allocation3], %s2169
          %s2171 = sand.u32 %s259, 1
          %s2172 = smul.addr %s2171, 8
          %s2173 = scalar_lea.vmem [#allocation2], %s2172
          %2174 = dma.done %s2170, 128
        $region76: #{tpu_custom_call.1} parent=67 // pred_fallthru
          _
      $region68: #{tpu_custom_call.1} parent=5 // pred_fallthru
        _
    $region6: #{tpu_custom_call.1} parent=1 // loop_footer
      %s24 = sadd.s32 1, %s20
    $region7: #{tpu_custom_call.1} parent=1 // loop_footer_branch
      %19 = sbr.rel target = $region3
    $region8: #{tpu_custom_call.1} parent=1 // loop_exit
      _
    %2175 = vsyncpa [#allocation3], 1
    %s2176 = scalar_lea.sflag [#allocation3], 1
    %2177 = vsyncpa %s2176, 1

</llo_original>
